<compile_context>
chip_gen: v7x
topology: tpu7x:2x2x1
jax: 0.10.0
libtpu: 0.0.40
codegen_flags: <defaults>
</compile_context>

<pallas_src>
import jax
import jax.numpy as jnp
from jax.experimental import pallas as pl
from jax.experimental.pallas import tpu as pltpu


def _mlp_adjacency_kernel(a_ref, xpjt_ref, inc_ref, wi_ref, ws_ref, bs_ref,
                          out_ref):
    # a_ref    : (1, TI, D)  VMEM  -- xp + bi, i-side rows of this block
    # xpjt_ref : (1, D, TJ)  VMEM  -- xp transposed, j-side columns
    # inc_ref  : (1, TI, TJ) VMEM  -- incidence block (pairwise dtype)
    # wi_ref   : (D,)        SMEM  -- proj_i weight (scalar per d)
    # ws_ref   : (D,)        SMEM  -- proj_s weight (scalar per d)
    # bs_ref   : (1,)        SMEM  -- proj_s bias
    # out_ref  : (1, TI, TJ) VMEM  -- f32 sigmoid outputs (lane-dense)
    _, TI, D = a_ref.shape
    TJ = xpjt_ref.shape[2]
    SI = min(128, TI)
    SJ = min(128, TJ)

    bs = bs_ref[0]

    # Static (Python) loops over 128x128 sub-tiles of the (TI, TJ) block:
    # every slice below has a static start -> zero-cost ref views, and each
    # sub-tile's f32 accumulator lives entirely in vregs.
    for ii in range(TI // SI):
        i0 = ii * SI
        for jj in range(TJ // SJ):
            j0 = jj * SJ
            inc = inc_ref[0, i0:i0 + SI, j0:j0 + SJ]          # (SI, SJ)
            acc = jnp.zeros((SI, SJ), jnp.float32)
            # D is small -> full static unroll (perf review: keep full unroll
            # for D <= ~32; a chunked fori_loop is preferable for large D).
            for d in range(D):
                wi_d = wi_ref[d].astype(inc.dtype)
                acol = a_ref[0, i0:i0 + SI, d:d + 1]          # (SI, 1)  i-side
                xrow = xpjt_ref[0, d:d + 1, j0:j0 + SJ]       # (1, SJ)  j-side
                # TODO(synk): the acol+xrow broadcast plane could be built on
                # the idle MXU (K=2 matmul) if a bundle dump shows the lane
                # broadcast lowering to VALU/XLU work.
                t = inc * wi_d + acol + xrow
                acc = acc + jnp.maximum(t, 0.0).astype(jnp.float32) * ws_ref[d]
            z = acc + bs
            # sigmoid via the idle EUP slot: exp + approximate reciprocal.
            out_ref[0, i0:i0 + SI, j0:j0 + SJ] = pl.reciprocal(
                1.0 + jnp.exp(-z), approx=True)


def _round_up(v, m):
    return ((v + m - 1) // m) * m


def _pick_block(ni, nj, d):
    """Block (TI, TJ) for the 128-aligned (N > 128) path.

    Budgets the number of statically-unrolled 128x128 sub-tiles per grid step
    (sub_tiles * D unrolled inner bodies) so code size / compile time stay sane
    while still amortizing the per-grid-step overhead.
    """
    budget = max(1, 256 // max(d, 1))
    ti, tj = 128, 128
    # Grow j first (keeps the lane-dense dimension long), then i.
    while (tj * 2 <= 512 and nj % (tj * 2) == 0
           and (ti // 128) * ((tj * 2) // 128) <= budget):
        tj *= 2
    while (ti * 2 <= 256 and ni % (ti * 2) == 0
           and ((ti * 2) // 128) * (tj // 128) <= budget):
        ti *= 2
    return ti, tj


def mlp_adjacency(x, inc, params, *, pairwise_dtype=jnp.float32,
                  use_core_parallel=False):
    """x: [B, N, D] f32, inc: [B, N, N] f32 -> [B, N, N, 1] f32."""
    B, N, D = x.shape
    wx, bx = params["wx"], params["bx"]
    wi, bi = params["wi"], params["bi"]
    ws, bs = params["ws"], params["bs"]

    # proj_x as one XLA matmul on the MXU, hoisted out of the Pallas kernel.
    # HIGHEST precision keeps f32 parity with the PyTorch reference.
    xp = jnp.einsum("bnd,kd->bnk", x, wx,
                    precision=jax.lax.Precision.HIGHEST) + bx       # (B, N, D)

    a = (xp + bi).astype(pairwise_dtype)                 # i-side rows, bi folded
    xpjt = jnp.transpose(xp, (0, 2, 1)).astype(pairwise_dtype)      # (B, D, N)
    inc_c = inc.astype(pairwise_dtype)

    if N <= 128:
        # Full-extent blocks: no padding, no output slice, one block per batch.
        ni_pad = nj_pad = N
        TI = TJ = N
    else:
        ni_pad = _round_up(N, 128)
        nj_pad = _round_up(N, 128)
        TI, TJ = _pick_block(ni_pad, nj_pad, D)

    if (ni_pad, nj_pad) != (N, N):
        # Ragged last tile (N > 128 and not a multiple of 128): pad up.
        a_in = jnp.pad(a, ((0, 0), (0, ni_pad - N), (0, 0)))
        xpjt_in = jnp.pad(xpjt, ((0, 0), (0, 0), (0, nj_pad - N)))
        inc_in = jnp.pad(inc_c, ((0, 0), (0, ni_pad - N), (0, nj_pad - N)))
    else:
        a_in, xpjt_in, inc_in = a, xpjt, inc_c

    wi_s = wi.reshape(D).astype(jnp.float32)     # proj_i weight (D, 1) -> (D,)
    ws_s = ws.reshape(D).astype(jnp.float32)     # proj_s weight (1, D) -> (D,)
    bs_s = bs.reshape(1).astype(jnp.float32)

    grid = (B, ni_pad // TI, nj_pad // TJ)

    if use_core_parallel:
        # v7x: explicitly shard the independent batch axis across the 2 TCs.
        dim_sem = (pltpu.CORE_PARALLEL, pltpu.PARALLEL, pltpu.PARALLEL)
    else:
        dim_sem = ("parallel", "parallel", "parallel")

    out = pl.pallas_call(
        _mlp_adjacency_kernel,
        out_shape=jax.ShapeDtypeStruct((B, ni_pad, nj_pad), jnp.float32),
        grid_spec=pltpu.PrefetchScalarGridSpec(
            num_scalar_prefetch=0,
            grid=grid,
            in_specs=[
                # j is the innermost grid axis -> the a (i-side) block stays
                # resident across the j sweep (no re-DMA).
                pl.BlockSpec((1, TI, D), lambda b, i, j: (b, i, 0)),    # a
                pl.BlockSpec((1, D, TJ), lambda b, i, j: (b, 0, j)),    # xp^T
                pl.BlockSpec((1, TI, TJ), lambda b, i, j: (b, i, j)),   # inc
                pl.BlockSpec(memory_space=pltpu.MemorySpace.SMEM),      # wi
                pl.BlockSpec(memory_space=pltpu.MemorySpace.SMEM),      # ws
                pl.BlockSpec(memory_space=pltpu.MemorySpace.SMEM),      # bs
            ],
            out_specs=pl.BlockSpec((1, TI, TJ), lambda b, i, j: (b, i, j)),
        ),
        compiler_params=pltpu.CompilerParams(dimension_semantics=dim_sem),
    )(a_in, xpjt_in, inc_in, wi_s, ws_s, bs_s)

    if (ni_pad, nj_pad) != (N, N):
        out = out[:, :N, :N]
    return out[..., None]                  # PyTorch output shape [B, N, N, 1]


def _reference(x, inc, params):
    xp = x @ params["wx"].T + params["bx"]                           # (B, N, D)
    incp = inc[..., None] * params["wi"].reshape(-1) + params["bi"]  # (B,N,N,D)
    s = jax.nn.relu(xp[:, None, :, :] + xp[:, :, None, :] + incp)
    return jax.nn.sigmoid(s @ params["ws"].reshape(-1) + params["bs"][0])[..., None]


if __name__ == "__main__":
    B, N, D = 2, 8, 32
    key = jax.random.PRNGKey(0)
    kx, ki, k1, k2, k3, k4, k5, k6 = jax.random.split(key, 8)

    x = jax.random.normal(kx, (B, N, D), dtype=jnp.float32)
    inc = jax.random.normal(ki, (B, N, N), dtype=jnp.float32)

    # deterministic parameter init (shapes follow nn.Linear: weight = (out, in))
    params = {
        "wx": jax.random.normal(k1, (D, D), dtype=jnp.float32) * 0.1,
        "bx": jax.random.normal(k2, (D,), dtype=jnp.float32) * 0.1,
        "wi": jax.random.normal(k3, (D, 1), dtype=jnp.float32) * 0.1,
        "bi": jax.random.normal(k4, (D,), dtype=jnp.float32) * 0.1,
        "ws": jax.random.normal(k5, (1, D), dtype=jnp.float32) * 0.1,
        "bs": jax.random.normal(k6, (1,), dtype=jnp.float32) * 0.1,
    }

    out = jax.jit(mlp_adjacency)(x, inc, params)
    out = jax.block_until_ready(out)

    ref = _reference(x, inc, params)
    assert out.shape == (B, N, N, 1), out.shape
    # Tolerance accounts for the EUP approximate reciprocal in the epilogue.
    max_err = float(jnp.max(jnp.abs(out - ref)))
    assert jnp.allclose(out, ref, atol=2e-3, rtol=2e-3), (
        f"mismatch vs reference; max abs err = {max_err}")

    print("KERNEL_OK")
</pallas_src>

<mosaic_0001>
module attributes {stable_mosaic.version = 11 : i64} {
  func.func @_mlp_adjacency_kernel(%arg0: i32, %arg1: i32, %arg2: i32, %arg3: memref<1x8x32xf32, #tpu.memory_space<vmem>>, %arg4: memref<1x32x8xf32, #tpu.memory_space<vmem>>, %arg5: memref<1x8x8xf32, #tpu.memory_space<vmem>>, %arg6: memref<32xf32, #tpu.memory_space<smem>>, %arg7: memref<32xf32, #tpu.memory_space<smem>>, %arg8: memref<1xf32, #tpu.memory_space<smem>>, %arg9: memref<1x8x8xf32, #tpu.memory_space<vmem>>) attributes {dimension_semantics = [#tpu.dimension_semantics<parallel>, #tpu.dimension_semantics<parallel>, #tpu.dimension_semantics<parallel>], iteration_bounds = array<i64: 2, 1, 1>, scalar_prefetch = 0 : i64, scratch_operands = 0 : i64, tpu.core_type = #tpu.core_type<tc>, window_params = [{transform_indices = @transform_0, window_bounds = array<i64: 1, 8, 32>}, {transform_indices = @transform_1, window_bounds = array<i64: 1, 32, 8>}, {transform_indices = @transform_2, window_bounds = array<i64: 1, 8, 8>}, {transform_indices = @transform_3, window_bounds = array<i64: 32>}, {transform_indices = @transform_4, window_bounds = array<i64: 32>}, {transform_indices = @transform_5, window_bounds = array<i64: 1>}, {transform_indices = @transform_6, window_bounds = array<i64: 1, 8, 8>}]} {
    %c0 = arith.constant 0 : index
    %0 = memref.load %arg8[%c0] : memref<1xf32, #tpu.memory_space<smem>>
    %c0_0 = arith.constant 0 : index
    %c0_1 = arith.constant 0 : index
    %c0_2 = arith.constant 0 : index
    %1 = vector.load %arg5[%c0_0, %c0_1, %c0_2] : memref<1x8x8xf32, #tpu.memory_space<vmem>>, vector<1x8x8xf32>
    %2 = vector.shape_cast %1 : vector<1x8x8xf32> to vector<8x8xf32>
    %cst = arith.constant 0.000000e+00 : f32
    %3 = vector.broadcast %cst : f32 to vector<8x8xf32>
    %c0_3 = arith.constant 0 : index
    %4 = memref.load %arg6[%c0_3] : memref<32xf32, #tpu.memory_space<smem>>
    %c0_4 = arith.constant 0 : index
    %c0_5 = arith.constant 0 : index
    %c0_6 = arith.constant 0 : index
    %5 = vector.load %arg3[%c0_4, %c0_5, %c0_6] : memref<1x8x32xf32, #tpu.memory_space<vmem>>, vector<1x8x1xf32>
    %6 = vector.shape_cast %5 : vector<1x8x1xf32> to vector<8x1xf32>
    %c0_7 = arith.constant 0 : index
    %c0_8 = arith.constant 0 : index
    %c0_9 = arith.constant 0 : index
    %7 = vector.load %arg4[%c0_7, %c0_8, %c0_9] : memref<1x32x8xf32, #tpu.memory_space<vmem>>, vector<1x1x8xf32>
    %8 = vector.shape_cast %7 : vector<1x1x8xf32> to vector<1x8xf32>
    %9 = vector.broadcast %4 : f32 to vector<8x8xf32>
    %10 = arith.mulf %2, %9 : vector<8x8xf32>
    %11 = vector.broadcast %6 : vector<8x1xf32> to vector<8x8xf32>
    %12 = arith.addf %10, %11 : vector<8x8xf32>
    %13 = vector.broadcast %8 : vector<1x8xf32> to vector<8x8xf32>
    %14 = arith.addf %12, %13 : vector<8x8xf32>
    %cst_10 = arith.constant 0.000000e+00 : f32
    %15 = vector.broadcast %cst_10 : f32 to vector<8x8xf32>
    %16 = arith.maximumf %14, %15 : vector<8x8xf32>
    %c0_11 = arith.constant 0 : index
    %17 = memref.load %arg7[%c0_11] : memref<32xf32, #tpu.memory_space<smem>>
    %18 = vector.broadcast %17 : f32 to vector<8x8xf32>
    %19 = arith.mulf %16, %18 : vector<8x8xf32>
    %20 = arith.addf %3, %19 : vector<8x8xf32>
    %c1 = arith.constant 1 : index
    %21 = memref.load %arg6[%c1] : memref<32xf32, #tpu.memory_space<smem>>
    %c0_12 = arith.constant 0 : index
    %c0_13 = arith.constant 0 : index
    %c1_14 = arith.constant 1 : index
    %22 = vector.load %arg3[%c0_12, %c0_13, %c1_14] : memref<1x8x32xf32, #tpu.memory_space<vmem>>, vector<1x8x1xf32>
    %23 = vector.shape_cast %22 : vector<1x8x1xf32> to vector<8x1xf32>
    %c0_15 = arith.constant 0 : index
    %c1_16 = arith.constant 1 : index
    %c0_17 = arith.constant 0 : index
    %24 = vector.load %arg4[%c0_15, %c1_16, %c0_17] : memref<1x32x8xf32, #tpu.memory_space<vmem>>, vector<1x1x8xf32>
    %25 = vector.shape_cast %24 : vector<1x1x8xf32> to vector<1x8xf32>
    %26 = vector.broadcast %21 : f32 to vector<8x8xf32>
    %27 = arith.mulf %2, %26 : vector<8x8xf32>
    %28 = vector.broadcast %23 : vector<8x1xf32> to vector<8x8xf32>
    %29 = arith.addf %27, %28 : vector<8x8xf32>
    %30 = vector.broadcast %25 : vector<1x8xf32> to vector<8x8xf32>
    %31 = arith.addf %29, %30 : vector<8x8xf32>
    %cst_18 = arith.constant 0.000000e+00 : f32
    %32 = vector.broadcast %cst_18 : f32 to vector<8x8xf32>
    %33 = arith.maximumf %31, %32 : vector<8x8xf32>
    %c1_19 = arith.constant 1 : index
    %34 = memref.load %arg7[%c1_19] : memref<32xf32, #tpu.memory_space<smem>>
    %35 = vector.broadcast %34 : f32 to vector<8x8xf32>
    %36 = arith.mulf %33, %35 : vector<8x8xf32>
    %37 = arith.addf %20, %36 : vector<8x8xf32>
    %c2 = arith.constant 2 : index
    %38 = memref.load %arg6[%c2] : memref<32xf32, #tpu.memory_space<smem>>
    %c0_20 = arith.constant 0 : index
    %c0_21 = arith.constant 0 : index
    %c2_22 = arith.constant 2 : index
    %39 = vector.load %arg3[%c0_20, %c0_21, %c2_22] : memref<1x8x32xf32, #tpu.memory_space<vmem>>, vector<1x8x1xf32>
    %40 = vector.shape_cast %39 : vector<1x8x1xf32> to vector<8x1xf32>
    %c0_23 = arith.constant 0 : index
    %c2_24 = arith.constant 2 : index
    %c0_25 = arith.constant 0 : index
    %41 = vector.load %arg4[%c0_23, %c2_24, %c0_25] : memref<1x32x8xf32, #tpu.memory_space<vmem>>, vector<1x1x8xf32>
    %42 = vector.shape_cast %41 : vector<1x1x8xf32> to vector<1x8xf32>
    %43 = vector.broadcast %38 : f32 to vector<8x8xf32>
    %44 = arith.mulf %2, %43 : vector<8x8xf32>
    %45 = vector.broadcast %40 : vector<8x1xf32> to vector<8x8xf32>
    %46 = arith.addf %44, %45 : vector<8x8xf32>
    %47 = vector.broadcast %42 : vector<1x8xf32> to vector<8x8xf32>
    %48 = arith.addf %46, %47 : vector<8x8xf32>
    %cst_26 = arith.constant 0.000000e+00 : f32
    %49 = vector.broadcast %cst_26 : f32 to vector<8x8xf32>
    %50 = arith.maximumf %48, %49 : vector<8x8xf32>
    %c2_27 = arith.constant 2 : index
    %51 = memref.load %arg7[%c2_27] : memref<32xf32, #tpu.memory_space<smem>>
    %52 = vector.broadcast %51 : f32 to vector<8x8xf32>
    %53 = arith.mulf %50, %52 : vector<8x8xf32>
    %54 = arith.addf %37, %53 : vector<8x8xf32>
    %c3 = arith.constant 3 : index
    %55 = memref.load %arg6[%c3] : memref<32xf32, #tpu.memory_space<smem>>
    %c0_28 = arith.constant 0 : index
    %c0_29 = arith.constant 0 : index
    %c3_30 = arith.constant 3 : index
    %56 = vector.load %arg3[%c0_28, %c0_29, %c3_30] : memref<1x8x32xf32, #tpu.memory_space<vmem>>, vector<1x8x1xf32>
    %57 = vector.shape_cast %56 : vector<1x8x1xf32> to vector<8x1xf32>
    %c0_31 = arith.constant 0 : index
    %c3_32 = arith.constant 3 : index
    %c0_33 = arith.constant 0 : index
    %58 = vector.load %arg4[%c0_31, %c3_32, %c0_33] : memref<1x32x8xf32, #tpu.memory_space<vmem>>, vector<1x1x8xf32>
    %59 = vector.shape_cast %58 : vector<1x1x8xf32> to vector<1x8xf32>
    %60 = vector.broadcast %55 : f32 to vector<8x8xf32>
    %61 = arith.mulf %2, %60 : vector<8x8xf32>
    %62 = vector.broadcast %57 : vector<8x1xf32> to vector<8x8xf32>
    %63 = arith.addf %61, %62 : vector<8x8xf32>
    %64 = vector.broadcast %59 : vector<1x8xf32> to vector<8x8xf32>
    %65 = arith.addf %63, %64 : vector<8x8xf32>
    %cst_34 = arith.constant 0.000000e+00 : f32
    %66 = vector.broadcast %cst_34 : f32 to vector<8x8xf32>
    %67 = arith.maximumf %65, %66 : vector<8x8xf32>
    %c3_35 = arith.constant 3 : index
    %68 = memref.load %arg7[%c3_35] : memref<32xf32, #tpu.memory_space<smem>>
    %69 = vector.broadcast %68 : f32 to vector<8x8xf32>
    %70 = arith.mulf %67, %69 : vector<8x8xf32>
    %71 = arith.addf %54, %70 : vector<8x8xf32>
    %c4 = arith.constant 4 : index
    %72 = memref.load %arg6[%c4] : memref<32xf32, #tpu.memory_space<smem>>
    %c0_36 = arith.constant 0 : index
    %c0_37 = arith.constant 0 : index
    %c4_38 = arith.constant 4 : index
    %73 = vector.load %arg3[%c0_36, %c0_37, %c4_38] : memref<1x8x32xf32, #tpu.memory_space<vmem>>, vector<1x8x1xf32>
    %74 = vector.shape_cast %73 : vector<1x8x1xf32> to vector<8x1xf32>
    %c0_39 = arith.constant 0 : index
    %c4_40 = arith.constant 4 : index
    %c0_41 = arith.constant 0 : index
    %75 = vector.load %arg4[%c0_39, %c4_40, %c0_41] : memref<1x32x8xf32, #tpu.memory_space<vmem>>, vector<1x1x8xf32>
    %76 = vector.shape_cast %75 : vector<1x1x8xf32> to vector<1x8xf32>
    %77 = vector.broadcast %72 : f32 to vector<8x8xf32>
    %78 = arith.mulf %2, %77 : vector<8x8xf32>
    %79 = vector.broadcast %74 : vector<8x1xf32> to vector<8x8xf32>
    %80 = arith.addf %78, %79 : vector<8x8xf32>
    %81 = vector.broadcast %76 : vector<1x8xf32> to vector<8x8xf32>
    %82 = arith.addf %80, %81 : vector<8x8xf32>
    %cst_42 = arith.constant 0.000000e+00 : f32
    %83 = vector.broadcast %cst_42 : f32 to vector<8x8xf32>
    %84 = arith.maximumf %82, %83 : vector<8x8xf32>
    %c4_43 = arith.constant 4 : index
    %85 = memref.load %arg7[%c4_43] : memref<32xf32, #tpu.memory_space<smem>>
    %86 = vector.broadcast %85 : f32 to vector<8x8xf32>
    %87 = arith.mulf %84, %86 : vector<8x8xf32>
    %88 = arith.addf %71, %87 : vector<8x8xf32>
    %c5 = arith.constant 5 : index
    %89 = memref.load %arg6[%c5] : memref<32xf32, #tpu.memory_space<smem>>
    %c0_44 = arith.constant 0 : index
    %c0_45 = arith.constant 0 : index
    %c5_46 = arith.constant 5 : index
    %90 = vector.load %arg3[%c0_44, %c0_45, %c5_46] : memref<1x8x32xf32, #tpu.memory_space<vmem>>, vector<1x8x1xf32>
    %91 = vector.shape_cast %90 : vector<1x8x1xf32> to vector<8x1xf32>
    %c0_47 = arith.constant 0 : index
    %c5_48 = arith.constant 5 : index
    %c0_49 = arith.constant 0 : index
    %92 = vector.load %arg4[%c0_47, %c5_48, %c0_49] : memref<1x32x8xf32, #tpu.memory_space<vmem>>, vector<1x1x8xf32>
    %93 = vector.shape_cast %92 : vector<1x1x8xf32> to vector<1x8xf32>
    %94 = vector.broadcast %89 : f32 to vector<8x8xf32>
    %95 = arith.mulf %2, %94 : vector<8x8xf32>
    %96 = vector.broadcast %91 : vector<8x1xf32> to vector<8x8xf32>
    %97 = arith.addf %95, %96 : vector<8x8xf32>
    %98 = vector.broadcast %93 : vector<1x8xf32> to vector<8x8xf32>
    %99 = arith.addf %97, %98 : vector<8x8xf32>
    %cst_50 = arith.constant 0.000000e+00 : f32
    %100 = vector.broadcast %cst_50 : f32 to vector<8x8xf32>
    %101 = arith.maximumf %99, %100 : vector<8x8xf32>
    %c5_51 = arith.constant 5 : index
    %102 = memref.load %arg7[%c5_51] : memref<32xf32, #tpu.memory_space<smem>>
    %103 = vector.broadcast %102 : f32 to vector<8x8xf32>
    %104 = arith.mulf %101, %103 : vector<8x8xf32>
    %105 = arith.addf %88, %104 : vector<8x8xf32>
    %c6 = arith.constant 6 : index
    %106 = memref.load %arg6[%c6] : memref<32xf32, #tpu.memory_space<smem>>
    %c0_52 = arith.constant 0 : index
    %c0_53 = arith.constant 0 : index
    %c6_54 = arith.constant 6 : index
    %107 = vector.load %arg3[%c0_52, %c0_53, %c6_54] : memref<1x8x32xf32, #tpu.memory_space<vmem>>, vector<1x8x1xf32>
    %108 = vector.shape_cast %107 : vector<1x8x1xf32> to vector<8x1xf32>
    %c0_55 = arith.constant 0 : index
    %c6_56 = arith.constant 6 : index
    %c0_57 = arith.constant 0 : index
    %109 = vector.load %arg4[%c0_55, %c6_56, %c0_57] : memref<1x32x8xf32, #tpu.memory_space<vmem>>, vector<1x1x8xf32>
    %110 = vector.shape_cast %109 : vector<1x1x8xf32> to vector<1x8xf32>
    %111 = vector.broadcast %106 : f32 to vector<8x8xf32>
    %112 = arith.mulf %2, %111 : vector<8x8xf32>
    %113 = vector.broadcast %108 : vector<8x1xf32> to vector<8x8xf32>
    %114 = arith.addf %112, %113 : vector<8x8xf32>
    %115 = vector.broadcast %110 : vector<1x8xf32> to vector<8x8xf32>
    %116 = arith.addf %114, %115 : vector<8x8xf32>
    %cst_58 = arith.constant 0.000000e+00 : f32
    %117 = vector.broadcast %cst_58 : f32 to vector<8x8xf32>
    %118 = arith.maximumf %116, %117 : vector<8x8xf32>
    %c6_59 = arith.constant 6 : index
    %119 = memref.load %arg7[%c6_59] : memref<32xf32, #tpu.memory_space<smem>>
    %120 = vector.broadcast %119 : f32 to vector<8x8xf32>
    %121 = arith.mulf %118, %120 : vector<8x8xf32>
    %122 = arith.addf %105, %121 : vector<8x8xf32>
    %c7 = arith.constant 7 : index
    %123 = memref.load %arg6[%c7] : memref<32xf32, #tpu.memory_space<smem>>
    %c0_60 = arith.constant 0 : index
    %c0_61 = arith.constant 0 : index
    %c7_62 = arith.constant 7 : index
    %124 = vector.load %arg3[%c0_60, %c0_61, %c7_62] : memref<1x8x32xf32, #tpu.memory_space<vmem>>, vector<1x8x1xf32>
    %125 = vector.shape_cast %124 : vector<1x8x1xf32> to vector<8x1xf32>
    %c0_63 = arith.constant 0 : index
    %c7_64 = arith.constant 7 : index
    %c0_65 = arith.constant 0 : index
    %126 = vector.load %arg4[%c0_63, %c7_64, %c0_65] : memref<1x32x8xf32, #tpu.memory_space<vmem>>, vector<1x1x8xf32>
    %127 = vector.shape_cast %126 : vector<1x1x8xf32> to vector<1x8xf32>
    %128 = vector.broadcast %123 : f32 to vector<8x8xf32>
    %129 = arith.mulf %2, %128 : vector<8x8xf32>
    %130 = vector.broadcast %125 : vector<8x1xf32> to vector<8x8xf32>
    %131 = arith.addf %129, %130 : vector<8x8xf32>
    %132 = vector.broadcast %127 : vector<1x8xf32> to vector<8x8xf32>
    %133 = arith.addf %131, %132 : vector<8x8xf32>
    %cst_66 = arith.constant 0.000000e+00 : f32
    %134 = vector.broadcast %cst_66 : f32 to vector<8x8xf32>
    %135 = arith.maximumf %133, %134 : vector<8x8xf32>
    %c7_67 = arith.constant 7 : index
    %136 = memref.load %arg7[%c7_67] : memref<32xf32, #tpu.memory_space<smem>>
    %137 = vector.broadcast %136 : f32 to vector<8x8xf32>
    %138 = arith.mulf %135, %137 : vector<8x8xf32>
    %139 = arith.addf %122, %138 : vector<8x8xf32>
    %c8 = arith.constant 8 : index
    %140 = memref.load %arg6[%c8] : memref<32xf32, #tpu.memory_space<smem>>
    %c0_68 = arith.constant 0 : index
    %c0_69 = arith.constant 0 : index
    %c8_70 = arith.constant 8 : index
    %141 = vector.load %arg3[%c0_68, %c0_69, %c8_70] : memref<1x8x32xf32, #tpu.memory_space<vmem>>, vector<1x8x1xf32>
    %142 = vector.shape_cast %141 : vector<1x8x1xf32> to vector<8x1xf32>
    %c0_71 = arith.constant 0 : index
    %c8_72 = arith.constant 8 : index
    %c0_73 = arith.constant 0 : index
    %143 = vector.load %arg4[%c0_71, %c8_72, %c0_73] : memref<1x32x8xf32, #tpu.memory_space<vmem>>, vector<1x1x8xf32>
    %144 = vector.shape_cast %143 : vector<1x1x8xf32> to vector<1x8xf32>
    %145 = vector.broadcast %140 : f32 to vector<8x8xf32>
    %146 = arith.mulf %2, %145 : vector<8x8xf32>
    %147 = vector.broadcast %142 : vector<8x1xf32> to vector<8x8xf32>
    %148 = arith.addf %146, %147 : vector<8x8xf32>
    %149 = vector.broadcast %144 : vector<1x8xf32> to vector<8x8xf32>
    %150 = arith.addf %148, %149 : vector<8x8xf32>
    %cst_74 = arith.constant 0.000000e+00 : f32
    %151 = vector.broadcast %cst_74 : f32 to vector<8x8xf32>
    %152 = arith.maximumf %150, %151 : vector<8x8xf32>
    %c8_75 = arith.constant 8 : index
    %153 = memref.load %arg7[%c8_75] : memref<32xf32, #tpu.memory_space<smem>>
    %154 = vector.broadcast %153 : f32 to vector<8x8xf32>
    %155 = arith.mulf %152, %154 : vector<8x8xf32>
    %156 = arith.addf %139, %155 : vector<8x8xf32>
    %c9 = arith.constant 9 : index
    %157 = memref.load %arg6[%c9] : memref<32xf32, #tpu.memory_space<smem>>
    %c0_76 = arith.constant 0 : index
    %c0_77 = arith.constant 0 : index
    %c9_78 = arith.constant 9 : index
    %158 = vector.load %arg3[%c0_76, %c0_77, %c9_78] : memref<1x8x32xf32, #tpu.memory_space<vmem>>, vector<1x8x1xf32>
    %159 = vector.shape_cast %158 : vector<1x8x1xf32> to vector<8x1xf32>
    %c0_79 = arith.constant 0 : index
    %c9_80 = arith.constant 9 : index
    %c0_81 = arith.constant 0 : index
    %160 = vector.load %arg4[%c0_79, %c9_80, %c0_81] : memref<1x32x8xf32, #tpu.memory_space<vmem>>, vector<1x1x8xf32>
    %161 = vector.shape_cast %160 : vector<1x1x8xf32> to vector<1x8xf32>
    %162 = vector.broadcast %157 : f32 to vector<8x8xf32>
    %163 = arith.mulf %2, %162 : vector<8x8xf32>
    %164 = vector.broadcast %159 : vector<8x1xf32> to vector<8x8xf32>
    %165 = arith.addf %163, %164 : vector<8x8xf32>
    %166 = vector.broadcast %161 : vector<1x8xf32> to vector<8x8xf32>
    %167 = arith.addf %165, %166 : vector<8x8xf32>
    %cst_82 = arith.constant 0.000000e+00 : f32
    %168 = vector.broadcast %cst_82 : f32 to vector<8x8xf32>
    %169 = arith.maximumf %167, %168 : vector<8x8xf32>
    %c9_83 = arith.constant 9 : index
    %170 = memref.load %arg7[%c9_83] : memref<32xf32, #tpu.memory_space<smem>>
    %171 = vector.broadcast %170 : f32 to vector<8x8xf32>
    %172 = arith.mulf %169, %171 : vector<8x8xf32>
    %173 = arith.addf %156, %172 : vector<8x8xf32>
    %c10 = arith.constant 10 : index
    %174 = memref.load %arg6[%c10] : memref<32xf32, #tpu.memory_space<smem>>
    %c0_84 = arith.constant 0 : index
    %c0_85 = arith.constant 0 : index
    %c10_86 = arith.constant 10 : index
    %175 = vector.load %arg3[%c0_84, %c0_85, %c10_86] : memref<1x8x32xf32, #tpu.memory_space<vmem>>, vector<1x8x1xf32>
    %176 = vector.shape_cast %175 : vector<1x8x1xf32> to vector<8x1xf32>
    %c0_87 = arith.constant 0 : index
    %c10_88 = arith.constant 10 : index
    %c0_89 = arith.constant 0 : index
    %177 = vector.load %arg4[%c0_87, %c10_88, %c0_89] : memref<1x32x8xf32, #tpu.memory_space<vmem>>, vector<1x1x8xf32>
    %178 = vector.shape_cast %177 : vector<1x1x8xf32> to vector<1x8xf32>
    %179 = vector.broadcast %174 : f32 to vector<8x8xf32>
    %180 = arith.mulf %2, %179 : vector<8x8xf32>
    %181 = vector.broadcast %176 : vector<8x1xf32> to vector<8x8xf32>
    %182 = arith.addf %180, %181 : vector<8x8xf32>
    %183 = vector.broadcast %178 : vector<1x8xf32> to vector<8x8xf32>
    %184 = arith.addf %182, %183 : vector<8x8xf32>
    %cst_90 = arith.constant 0.000000e+00 : f32
    %185 = vector.broadcast %cst_90 : f32 to vector<8x8xf32>
    %186 = arith.maximumf %184, %185 : vector<8x8xf32>
    %c10_91 = arith.constant 10 : index
    %187 = memref.load %arg7[%c10_91] : memref<32xf32, #tpu.memory_space<smem>>
    %188 = vector.broadcast %187 : f32 to vector<8x8xf32>
    %189 = arith.mulf %186, %188 : vector<8x8xf32>
    %190 = arith.addf %173, %189 : vector<8x8xf32>
    %c11 = arith.constant 11 : index
    %191 = memref.load %arg6[%c11] : memref<32xf32, #tpu.memory_space<smem>>
    %c0_92 = arith.constant 0 : index
    %c0_93 = arith.constant 0 : index
    %c11_94 = arith.constant 11 : index
    %192 = vector.load %arg3[%c0_92, %c0_93, %c11_94] : memref<1x8x32xf32, #tpu.memory_space<vmem>>, vector<1x8x1xf32>
    %193 = vector.shape_cast %192 : vector<1x8x1xf32> to vector<8x1xf32>
    %c0_95 = arith.constant 0 : index
    %c11_96 = arith.constant 11 : index
    %c0_97 = arith.constant 0 : index
    %194 = vector.load %arg4[%c0_95, %c11_96, %c0_97] : memref<1x32x8xf32, #tpu.memory_space<vmem>>, vector<1x1x8xf32>
    %195 = vector.shape_cast %194 : vector<1x1x8xf32> to vector<1x8xf32>
    %196 = vector.broadcast %191 : f32 to vector<8x8xf32>
    %197 = arith.mulf %2, %196 : vector<8x8xf32>
    %198 = vector.broadcast %193 : vector<8x1xf32> to vector<8x8xf32>
    %199 = arith.addf %197, %198 : vector<8x8xf32>
    %200 = vector.broadcast %195 : vector<1x8xf32> to vector<8x8xf32>
    %201 = arith.addf %199, %200 : vector<8x8xf32>
    %cst_98 = arith.constant 0.000000e+00 : f32
    %202 = vector.broadcast %cst_98 : f32 to vector<8x8xf32>
    %203 = arith.maximumf %201, %202 : vector<8x8xf32>
    %c11_99 = arith.constant 11 : index
    %204 = memref.load %arg7[%c11_99] : memref<32xf32, #tpu.memory_space<smem>>
    %205 = vector.broadcast %204 : f32 to vector<8x8xf32>
    %206 = arith.mulf %203, %205 : vector<8x8xf32>
    %207 = arith.addf %190, %206 : vector<8x8xf32>
    %c12 = arith.constant 12 : index
    %208 = memref.load %arg6[%c12] : memref<32xf32, #tpu.memory_space<smem>>
    %c0_100 = arith.constant 0 : index
    %c0_101 = arith.constant 0 : index
    %c12_102 = arith.constant 12 : index
    %209 = vector.load %arg3[%c0_100, %c0_101, %c12_102] : memref<1x8x32xf32, #tpu.memory_space<vmem>>, vector<1x8x1xf32>
    %210 = vector.shape_cast %209 : vector<1x8x1xf32> to vector<8x1xf32>
    %c0_103 = arith.constant 0 : index
    %c12_104 = arith.constant 12 : index
    %c0_105 = arith.constant 0 : index
    %211 = vector.load %arg4[%c0_103, %c12_104, %c0_105] : memref<1x32x8xf32, #tpu.memory_space<vmem>>, vector<1x1x8xf32>
    %212 = vector.shape_cast %211 : vector<1x1x8xf32> to vector<1x8xf32>
    %213 = vector.broadcast %208 : f32 to vector<8x8xf32>
    %214 = arith.mulf %2, %213 : vector<8x8xf32>
    %215 = vector.broadcast %210 : vector<8x1xf32> to vector<8x8xf32>
    %216 = arith.addf %214, %215 : vector<8x8xf32>
    %217 = vector.broadcast %212 : vector<1x8xf32> to vector<8x8xf32>
    %218 = arith.addf %216, %217 : vector<8x8xf32>
    %cst_106 = arith.constant 0.000000e+00 : f32
    %219 = vector.broadcast %cst_106 : f32 to vector<8x8xf32>
    %220 = arith.maximumf %218, %219 : vector<8x8xf32>
    %c12_107 = arith.constant 12 : index
    %221 = memref.load %arg7[%c12_107] : memref<32xf32, #tpu.memory_space<smem>>
    %222 = vector.broadcast %221 : f32 to vector<8x8xf32>
    %223 = arith.mulf %220, %222 : vector<8x8xf32>
    %224 = arith.addf %207, %223 : vector<8x8xf32>
    %c13 = arith.constant 13 : index
    %225 = memref.load %arg6[%c13] : memref<32xf32, #tpu.memory_space<smem>>
    %c0_108 = arith.constant 0 : index
    %c0_109 = arith.constant 0 : index
    %c13_110 = arith.constant 13 : index
    %226 = vector.load %arg3[%c0_108, %c0_109, %c13_110] : memref<1x8x32xf32, #tpu.memory_space<vmem>>, vector<1x8x1xf32>
    %227 = vector.shape_cast %226 : vector<1x8x1xf32> to vector<8x1xf32>
    %c0_111 = arith.constant 0 : index
    %c13_112 = arith.constant 13 : index
    %c0_113 = arith.constant 0 : index
    %228 = vector.load %arg4[%c0_111, %c13_112, %c0_113] : memref<1x32x8xf32, #tpu.memory_space<vmem>>, vector<1x1x8xf32>
    %229 = vector.shape_cast %228 : vector<1x1x8xf32> to vector<1x8xf32>
    %230 = vector.broadcast %225 : f32 to vector<8x8xf32>
    %231 = arith.mulf %2, %230 : vector<8x8xf32>
    %232 = vector.broadcast %227 : vector<8x1xf32> to vector<8x8xf32>
    %233 = arith.addf %231, %232 : vector<8x8xf32>
    %234 = vector.broadcast %229 : vector<1x8xf32> to vector<8x8xf32>
    %235 = arith.addf %233, %234 : vector<8x8xf32>
    %cst_114 = arith.constant 0.000000e+00 : f32
    %236 = vector.broadcast %cst_114 : f32 to vector<8x8xf32>
    %237 = arith.maximumf %235, %236 : vector<8x8xf32>
    %c13_115 = arith.constant 13 : index
    %238 = memref.load %arg7[%c13_115] : memref<32xf32, #tpu.memory_space<smem>>
    %239 = vector.broadcast %238 : f32 to vector<8x8xf32>
    %240 = arith.mulf %237, %239 : vector<8x8xf32>
    %241 = arith.addf %224, %240 : vector<8x8xf32>
    %c14 = arith.constant 14 : index
    %242 = memref.load %arg6[%c14] : memref<32xf32, #tpu.memory_space<smem>>
    %c0_116 = arith.constant 0 : index
    %c0_117 = arith.constant 0 : index
    %c14_118 = arith.constant 14 : index
    %243 = vector.load %arg3[%c0_116, %c0_117, %c14_118] : memref<1x8x32xf32, #tpu.memory_space<vmem>>, vector<1x8x1xf32>
    %244 = vector.shape_cast %243 : vector<1x8x1xf32> to vector<8x1xf32>
    %c0_119 = arith.constant 0 : index
    %c14_120 = arith.constant 14 : index
    %c0_121 = arith.constant 0 : index
    %245 = vector.load %arg4[%c0_119, %c14_120, %c0_121] : memref<1x32x8xf32, #tpu.memory_space<vmem>>, vector<1x1x8xf32>
    %246 = vector.shape_cast %245 : vector<1x1x8xf32> to vector<1x8xf32>
    %247 = vector.broadcast %242 : f32 to vector<8x8xf32>
    %248 = arith.mulf %2, %247 : vector<8x8xf32>
    %249 = vector.broadcast %244 : vector<8x1xf32> to vector<8x8xf32>
    %250 = arith.addf %248, %249 : vector<8x8xf32>
    %251 = vector.broadcast %246 : vector<1x8xf32> to vector<8x8xf32>
    %252 = arith.addf %250, %251 : vector<8x8xf32>
    %cst_122 = arith.constant 0.000000e+00 : f32
    %253 = vector.broadcast %cst_122 : f32 to vector<8x8xf32>
    %254 = arith.maximumf %252, %253 : vector<8x8xf32>
    %c14_123 = arith.constant 14 : index
    %255 = memref.load %arg7[%c14_123] : memref<32xf32, #tpu.memory_space<smem>>
    %256 = vector.broadcast %255 : f32 to vector<8x8xf32>
    %257 = arith.mulf %254, %256 : vector<8x8xf32>
    %258 = arith.addf %241, %257 : vector<8x8xf32>
    %c15 = arith.constant 15 : index
    %259 = memref.load %arg6[%c15] : memref<32xf32, #tpu.memory_space<smem>>
    %c0_124 = arith.constant 0 : index
    %c0_125 = arith.constant 0 : index
    %c15_126 = arith.constant 15 : index
    %260 = vector.load %arg3[%c0_124, %c0_125, %c15_126] : memref<1x8x32xf32, #tpu.memory_space<vmem>>, vector<1x8x1xf32>
    %261 = vector.shape_cast %260 : vector<1x8x1xf32> to vector<8x1xf32>
    %c0_127 = arith.constant 0 : index
    %c15_128 = arith.constant 15 : index
    %c0_129 = arith.constant 0 : index
    %262 = vector.load %arg4[%c0_127, %c15_128, %c0_129] : memref<1x32x8xf32, #tpu.memory_space<vmem>>, vector<1x1x8xf32>
    %263 = vector.shape_cast %262 : vector<1x1x8xf32> to vector<1x8xf32>
    %264 = vector.broadcast %259 : f32 to vector<8x8xf32>
    %265 = arith.mulf %2, %264 : vector<8x8xf32>
    %266 = vector.broadcast %261 : vector<8x1xf32> to vector<8x8xf32>
    %267 = arith.addf %265, %266 : vector<8x8xf32>
    %268 = vector.broadcast %263 : vector<1x8xf32> to vector<8x8xf32>
    %269 = arith.addf %267, %268 : vector<8x8xf32>
    %cst_130 = arith.constant 0.000000e+00 : f32
    %270 = vector.broadcast %cst_130 : f32 to vector<8x8xf32>
    %271 = arith.maximumf %269, %270 : vector<8x8xf32>
    %c15_131 = arith.constant 15 : index
    %272 = memref.load %arg7[%c15_131] : memref<32xf32, #tpu.memory_space<smem>>
    %273 = vector.broadcast %272 : f32 to vector<8x8xf32>
    %274 = arith.mulf %271, %273 : vector<8x8xf32>
    %275 = arith.addf %258, %274 : vector<8x8xf32>
    %c16 = arith.constant 16 : index
    %276 = memref.load %arg6[%c16] : memref<32xf32, #tpu.memory_space<smem>>
    %c0_132 = arith.constant 0 : index
    %c0_133 = arith.constant 0 : index
    %c16_134 = arith.constant 16 : index
    %277 = vector.load %arg3[%c0_132, %c0_133, %c16_134] : memref<1x8x32xf32, #tpu.memory_space<vmem>>, vector<1x8x1xf32>
    %278 = vector.shape_cast %277 : vector<1x8x1xf32> to vector<8x1xf32>
    %c0_135 = arith.constant 0 : index
    %c16_136 = arith.constant 16 : index
    %c0_137 = arith.constant 0 : index
    %279 = vector.load %arg4[%c0_135, %c16_136, %c0_137] : memref<1x32x8xf32, #tpu.memory_space<vmem>>, vector<1x1x8xf32>
    %280 = vector.shape_cast %279 : vector<1x1x8xf32> to vector<1x8xf32>
    %281 = vector.broadcast %276 : f32 to vector<8x8xf32>
    %282 = arith.mulf %2, %281 : vector<8x8xf32>
    %283 = vector.broadcast %278 : vector<8x1xf32> to vector<8x8xf32>
    %284 = arith.addf %282, %283 : vector<8x8xf32>
    %285 = vector.broadcast %280 : vector<1x8xf32> to vector<8x8xf32>
    %286 = arith.addf %284, %285 : vector<8x8xf32>
    %cst_138 = arith.constant 0.000000e+00 : f32
    %287 = vector.broadcast %cst_138 : f32 to vector<8x8xf32>
    %288 = arith.maximumf %286, %287 : vector<8x8xf32>
    %c16_139 = arith.constant 16 : index
    %289 = memref.load %arg7[%c16_139] : memref<32xf32, #tpu.memory_space<smem>>
    %290 = vector.broadcast %289 : f32 to vector<8x8xf32>
    %291 = arith.mulf %288, %290 : vector<8x8xf32>
    %292 = arith.addf %275, %291 : vector<8x8xf32>
    %c17 = arith.constant 17 : index
    %293 = memref.load %arg6[%c17] : memref<32xf32, #tpu.memory_space<smem>>
    %c0_140 = arith.constant 0 : index
    %c0_141 = arith.constant 0 : index
    %c17_142 = arith.constant 17 : index
    %294 = vector.load %arg3[%c0_140, %c0_141, %c17_142] : memref<1x8x32xf32, #tpu.memory_space<vmem>>, vector<1x8x1xf32>
    %295 = vector.shape_cast %294 : vector<1x8x1xf32> to vector<8x1xf32>
    %c0_143 = arith.constant 0 : index
    %c17_144 = arith.constant 17 : index
    %c0_145 = arith.constant 0 : index
    %296 = vector.load %arg4[%c0_143, %c17_144, %c0_145] : memref<1x32x8xf32, #tpu.memory_space<vmem>>, vector<1x1x8xf32>
    %297 = vector.shape_cast %296 : vector<1x1x8xf32> to vector<1x8xf32>
    %298 = vector.broadcast %293 : f32 to vector<8x8xf32>
    %299 = arith.mulf %2, %298 : vector<8x8xf32>
    %300 = vector.broadcast %295 : vector<8x1xf32> to vector<8x8xf32>
    %301 = arith.addf %299, %300 : vector<8x8xf32>
    %302 = vector.broadcast %297 : vector<1x8xf32> to vector<8x8xf32>
    %303 = arith.addf %301, %302 : vector<8x8xf32>
    %cst_146 = arith.constant 0.000000e+00 : f32
    %304 = vector.broadcast %cst_146 : f32 to vector<8x8xf32>
    %305 = arith.maximumf %303, %304 : vector<8x8xf32>
    %c17_147 = arith.constant 17 : index
    %306 = memref.load %arg7[%c17_147] : memref<32xf32, #tpu.memory_space<smem>>
    %307 = vector.broadcast %306 : f32 to vector<8x8xf32>
    %308 = arith.mulf %305, %307 : vector<8x8xf32>
    %309 = arith.addf %292, %308 : vector<8x8xf32>
    %c18 = arith.constant 18 : index
    %310 = memref.load %arg6[%c18] : memref<32xf32, #tpu.memory_space<smem>>
    %c0_148 = arith.constant 0 : index
    %c0_149 = arith.constant 0 : index
    %c18_150 = arith.constant 18 : index
    %311 = vector.load %arg3[%c0_148, %c0_149, %c18_150] : memref<1x8x32xf32, #tpu.memory_space<vmem>>, vector<1x8x1xf32>
    %312 = vector.shape_cast %311 : vector<1x8x1xf32> to vector<8x1xf32>
    %c0_151 = arith.constant 0 : index
    %c18_152 = arith.constant 18 : index
    %c0_153 = arith.constant 0 : index
    %313 = vector.load %arg4[%c0_151, %c18_152, %c0_153] : memref<1x32x8xf32, #tpu.memory_space<vmem>>, vector<1x1x8xf32>
    %314 = vector.shape_cast %313 : vector<1x1x8xf32> to vector<1x8xf32>
    %315 = vector.broadcast %310 : f32 to vector<8x8xf32>
    %316 = arith.mulf %2, %315 : vector<8x8xf32>
    %317 = vector.broadcast %312 : vector<8x1xf32> to vector<8x8xf32>
    %318 = arith.addf %316, %317 : vector<8x8xf32>
    %319 = vector.broadcast %314 : vector<1x8xf32> to vector<8x8xf32>
    %320 = arith.addf %318, %319 : vector<8x8xf32>
    %cst_154 = arith.constant 0.000000e+00 : f32
    %321 = vector.broadcast %cst_154 : f32 to vector<8x8xf32>
    %322 = arith.maximumf %320, %321 : vector<8x8xf32>
    %c18_155 = arith.constant 18 : index
    %323 = memref.load %arg7[%c18_155] : memref<32xf32, #tpu.memory_space<smem>>
    %324 = vector.broadcast %323 : f32 to vector<8x8xf32>
    %325 = arith.mulf %322, %324 : vector<8x8xf32>
    %326 = arith.addf %309, %325 : vector<8x8xf32>
    %c19 = arith.constant 19 : index
    %327 = memref.load %arg6[%c19] : memref<32xf32, #tpu.memory_space<smem>>
    %c0_156 = arith.constant 0 : index
    %c0_157 = arith.constant 0 : index
    %c19_158 = arith.constant 19 : index
    %328 = vector.load %arg3[%c0_156, %c0_157, %c19_158] : memref<1x8x32xf32, #tpu.memory_space<vmem>>, vector<1x8x1xf32>
    %329 = vector.shape_cast %328 : vector<1x8x1xf32> to vector<8x1xf32>
    %c0_159 = arith.constant 0 : index
    %c19_160 = arith.constant 19 : index
    %c0_161 = arith.constant 0 : index
    %330 = vector.load %arg4[%c0_159, %c19_160, %c0_161] : memref<1x32x8xf32, #tpu.memory_space<vmem>>, vector<1x1x8xf32>
    %331 = vector.shape_cast %330 : vector<1x1x8xf32> to vector<1x8xf32>
    %332 = vector.broadcast %327 : f32 to vector<8x8xf32>
    %333 = arith.mulf %2, %332 : vector<8x8xf32>
    %334 = vector.broadcast %329 : vector<8x1xf32> to vector<8x8xf32>
    %335 = arith.addf %333, %334 : vector<8x8xf32>
    %336 = vector.broadcast %331 : vector<1x8xf32> to vector<8x8xf32>
    %337 = arith.addf %335, %336 : vector<8x8xf32>
    %cst_162 = arith.constant 0.000000e+00 : f32
    %338 = vector.broadcast %cst_162 : f32 to vector<8x8xf32>
    %339 = arith.maximumf %337, %338 : vector<8x8xf32>
    %c19_163 = arith.constant 19 : index
    %340 = memref.load %arg7[%c19_163] : memref<32xf32, #tpu.memory_space<smem>>
    %341 = vector.broadcast %340 : f32 to vector<8x8xf32>
    %342 = arith.mulf %339, %341 : vector<8x8xf32>
    %343 = arith.addf %326, %342 : vector<8x8xf32>
    %c20 = arith.constant 20 : index
    %344 = memref.load %arg6[%c20] : memref<32xf32, #tpu.memory_space<smem>>
    %c0_164 = arith.constant 0 : index
    %c0_165 = arith.constant 0 : index
    %c20_166 = arith.constant 20 : index
    %345 = vector.load %arg3[%c0_164, %c0_165, %c20_166] : memref<1x8x32xf32, #tpu.memory_space<vmem>>, vector<1x8x1xf32>
    %346 = vector.shape_cast %345 : vector<1x8x1xf32> to vector<8x1xf32>
    %c0_167 = arith.constant 0 : index
    %c20_168 = arith.constant 20 : index
    %c0_169 = arith.constant 0 : index
    %347 = vector.load %arg4[%c0_167, %c20_168, %c0_169] : memref<1x32x8xf32, #tpu.memory_space<vmem>>, vector<1x1x8xf32>
    %348 = vector.shape_cast %347 : vector<1x1x8xf32> to vector<1x8xf32>
    %349 = vector.broadcast %344 : f32 to vector<8x8xf32>
    %350 = arith.mulf %2, %349 : vector<8x8xf32>
    %351 = vector.broadcast %346 : vector<8x1xf32> to vector<8x8xf32>
    %352 = arith.addf %350, %351 : vector<8x8xf32>
    %353 = vector.broadcast %348 : vector<1x8xf32> to vector<8x8xf32>
    %354 = arith.addf %352, %353 : vector<8x8xf32>
    %cst_170 = arith.constant 0.000000e+00 : f32
    %355 = vector.broadcast %cst_170 : f32 to vector<8x8xf32>
    %356 = arith.maximumf %354, %355 : vector<8x8xf32>
    %c20_171 = arith.constant 20 : index
    %357 = memref.load %arg7[%c20_171] : memref<32xf32, #tpu.memory_space<smem>>
    %358 = vector.broadcast %357 : f32 to vector<8x8xf32>
    %359 = arith.mulf %356, %358 : vector<8x8xf32>
    %360 = arith.addf %343, %359 : vector<8x8xf32>
    %c21 = arith.constant 21 : index
    %361 = memref.load %arg6[%c21] : memref<32xf32, #tpu.memory_space<smem>>
    %c0_172 = arith.constant 0 : index
    %c0_173 = arith.constant 0 : index
    %c21_174 = arith.constant 21 : index
    %362 = vector.load %arg3[%c0_172, %c0_173, %c21_174] : memref<1x8x32xf32, #tpu.memory_space<vmem>>, vector<1x8x1xf32>
    %363 = vector.shape_cast %362 : vector<1x8x1xf32> to vector<8x1xf32>
    %c0_175 = arith.constant 0 : index
    %c21_176 = arith.constant 21 : index
    %c0_177 = arith.constant 0 : index
    %364 = vector.load %arg4[%c0_175, %c21_176, %c0_177] : memref<1x32x8xf32, #tpu.memory_space<vmem>>, vector<1x1x8xf32>
    %365 = vector.shape_cast %364 : vector<1x1x8xf32> to vector<1x8xf32>
    %366 = vector.broadcast %361 : f32 to vector<8x8xf32>
    %367 = arith.mulf %2, %366 : vector<8x8xf32>
    %368 = vector.broadcast %363 : vector<8x1xf32> to vector<8x8xf32>
    %369 = arith.addf %367, %368 : vector<8x8xf32>
    %370 = vector.broadcast %365 : vector<1x8xf32> to vector<8x8xf32>
    %371 = arith.addf %369, %370 : vector<8x8xf32>
    %cst_178 = arith.constant 0.000000e+00 : f32
    %372 = vector.broadcast %cst_178 : f32 to vector<8x8xf32>
    %373 = arith.maximumf %371, %372 : vector<8x8xf32>
    %c21_179 = arith.constant 21 : index
    %374 = memref.load %arg7[%c21_179] : memref<32xf32, #tpu.memory_space<smem>>
    %375 = vector.broadcast %374 : f32 to vector<8x8xf32>
    %376 = arith.mulf %373, %375 : vector<8x8xf32>
    %377 = arith.addf %360, %376 : vector<8x8xf32>
    %c22 = arith.constant 22 : index
    %378 = memref.load %arg6[%c22] : memref<32xf32, #tpu.memory_space<smem>>
    %c0_180 = arith.constant 0 : index
    %c0_181 = arith.constant 0 : index
    %c22_182 = arith.constant 22 : index
    %379 = vector.load %arg3[%c0_180, %c0_181, %c22_182] : memref<1x8x32xf32, #tpu.memory_space<vmem>>, vector<1x8x1xf32>
    %380 = vector.shape_cast %379 : vector<1x8x1xf32> to vector<8x1xf32>
    %c0_183 = arith.constant 0 : index
    %c22_184 = arith.constant 22 : index
    %c0_185 = arith.constant 0 : index
    %381 = vector.load %arg4[%c0_183, %c22_184, %c0_185] : memref<1x32x8xf32, #tpu.memory_space<vmem>>, vector<1x1x8xf32>
    %382 = vector.shape_cast %381 : vector<1x1x8xf32> to vector<1x8xf32>
    %383 = vector.broadcast %378 : f32 to vector<8x8xf32>
    %384 = arith.mulf %2, %383 : vector<8x8xf32>
    %385 = vector.broadcast %380 : vector<8x1xf32> to vector<8x8xf32>
    %386 = arith.addf %384, %385 : vector<8x8xf32>
    %387 = vector.broadcast %382 : vector<1x8xf32> to vector<8x8xf32>
    %388 = arith.addf %386, %387 : vector<8x8xf32>
    %cst_186 = arith.constant 0.000000e+00 : f32
    %389 = vector.broadcast %cst_186 : f32 to vector<8x8xf32>
    %390 = arith.maximumf %388, %389 : vector<8x8xf32>
    %c22_187 = arith.constant 22 : index
    %391 = memref.load %arg7[%c22_187] : memref<32xf32, #tpu.memory_space<smem>>
    %392 = vector.broadcast %391 : f32 to vector<8x8xf32>
    %393 = arith.mulf %390, %392 : vector<8x8xf32>
    %394 = arith.addf %377, %393 : vector<8x8xf32>
    %c23 = arith.constant 23 : index
    %395 = memref.load %arg6[%c23] : memref<32xf32, #tpu.memory_space<smem>>
    %c0_188 = arith.constant 0 : index
    %c0_189 = arith.constant 0 : index
    %c23_190 = arith.constant 23 : index
    %396 = vector.load %arg3[%c0_188, %c0_189, %c23_190] : memref<1x8x32xf32, #tpu.memory_space<vmem>>, vector<1x8x1xf32>
    %397 = vector.shape_cast %396 : vector<1x8x1xf32> to vector<8x1xf32>
    %c0_191 = arith.constant 0 : index
    %c23_192 = arith.constant 23 : index
    %c0_193 = arith.constant 0 : index
    %398 = vector.load %arg4[%c0_191, %c23_192, %c0_193] : memref<1x32x8xf32, #tpu.memory_space<vmem>>, vector<1x1x8xf32>
    %399 = vector.shape_cast %398 : vector<1x1x8xf32> to vector<1x8xf32>
    %400 = vector.broadcast %395 : f32 to vector<8x8xf32>
    %401 = arith.mulf %2, %400 : vector<8x8xf32>
    %402 = vector.broadcast %397 : vector<8x1xf32> to vector<8x8xf32>
    %403 = arith.addf %401, %402 : vector<8x8xf32>
    %404 = vector.broadcast %399 : vector<1x8xf32> to vector<8x8xf32>
    %405 = arith.addf %403, %404 : vector<8x8xf32>
    %cst_194 = arith.constant 0.000000e+00 : f32
    %406 = vector.broadcast %cst_194 : f32 to vector<8x8xf32>
    %407 = arith.maximumf %405, %406 : vector<8x8xf32>
    %c23_195 = arith.constant 23 : index
    %408 = memref.load %arg7[%c23_195] : memref<32xf32, #tpu.memory_space<smem>>
    %409 = vector.broadcast %408 : f32 to vector<8x8xf32>
    %410 = arith.mulf %407, %409 : vector<8x8xf32>
    %411 = arith.addf %394, %410 : vector<8x8xf32>
    %c24 = arith.constant 24 : index
    %412 = memref.load %arg6[%c24] : memref<32xf32, #tpu.memory_space<smem>>
    %c0_196 = arith.constant 0 : index
    %c0_197 = arith.constant 0 : index
    %c24_198 = arith.constant 24 : index
    %413 = vector.load %arg3[%c0_196, %c0_197, %c24_198] : memref<1x8x32xf32, #tpu.memory_space<vmem>>, vector<1x8x1xf32>
    %414 = vector.shape_cast %413 : vector<1x8x1xf32> to vector<8x1xf32>
    %c0_199 = arith.constant 0 : index
    %c24_200 = arith.constant 24 : index
    %c0_201 = arith.constant 0 : index
    %415 = vector.load %arg4[%c0_199, %c24_200, %c0_201] : memref<1x32x8xf32, #tpu.memory_space<vmem>>, vector<1x1x8xf32>
    %416 = vector.shape_cast %415 : vector<1x1x8xf32> to vector<1x8xf32>
    %417 = vector.broadcast %412 : f32 to vector<8x8xf32>
    %418 = arith.mulf %2, %417 : vector<8x8xf32>
    %419 = vector.broadcast %414 : vector<8x1xf32> to vector<8x8xf32>
    %420 = arith.addf %418, %419 : vector<8x8xf32>
    %421 = vector.broadcast %416 : vector<1x8xf32> to vector<8x8xf32>
    %422 = arith.addf %420, %421 : vector<8x8xf32>
    %cst_202 = arith.constant 0.000000e+00 : f32
    %423 = vector.broadcast %cst_202 : f32 to vector<8x8xf32>
    %424 = arith.maximumf %422, %423 : vector<8x8xf32>
    %c24_203 = arith.constant 24 : index
    %425 = memref.load %arg7[%c24_203] : memref<32xf32, #tpu.memory_space<smem>>
    %426 = vector.broadcast %425 : f32 to vector<8x8xf32>
    %427 = arith.mulf %424, %426 : vector<8x8xf32>
    %428 = arith.addf %411, %427 : vector<8x8xf32>
    %c25 = arith.constant 25 : index
    %429 = memref.load %arg6[%c25] : memref<32xf32, #tpu.memory_space<smem>>
    %c0_204 = arith.constant 0 : index
    %c0_205 = arith.constant 0 : index
    %c25_206 = arith.constant 25 : index
    %430 = vector.load %arg3[%c0_204, %c0_205, %c25_206] : memref<1x8x32xf32, #tpu.memory_space<vmem>>, vector<1x8x1xf32>
    %431 = vector.shape_cast %430 : vector<1x8x1xf32> to vector<8x1xf32>
    %c0_207 = arith.constant 0 : index
    %c25_208 = arith.constant 25 : index
    %c0_209 = arith.constant 0 : index
    %432 = vector.load %arg4[%c0_207, %c25_208, %c0_209] : memref<1x32x8xf32, #tpu.memory_space<vmem>>, vector<1x1x8xf32>
    %433 = vector.shape_cast %432 : vector<1x1x8xf32> to vector<1x8xf32>
    %434 = vector.broadcast %429 : f32 to vector<8x8xf32>
    %435 = arith.mulf %2, %434 : vector<8x8xf32>
    %436 = vector.broadcast %431 : vector<8x1xf32> to vector<8x8xf32>
    %437 = arith.addf %435, %436 : vector<8x8xf32>
    %438 = vector.broadcast %433 : vector<1x8xf32> to vector<8x8xf32>
    %439 = arith.addf %437, %438 : vector<8x8xf32>
    %cst_210 = arith.constant 0.000000e+00 : f32
    %440 = vector.broadcast %cst_210 : f32 to vector<8x8xf32>
    %441 = arith.maximumf %439, %440 : vector<8x8xf32>
    %c25_211 = arith.constant 25 : index
    %442 = memref.load %arg7[%c25_211] : memref<32xf32, #tpu.memory_space<smem>>
    %443 = vector.broadcast %442 : f32 to vector<8x8xf32>
    %444 = arith.mulf %441, %443 : vector<8x8xf32>
    %445 = arith.addf %428, %444 : vector<8x8xf32>
    %c26 = arith.constant 26 : index
    %446 = memref.load %arg6[%c26] : memref<32xf32, #tpu.memory_space<smem>>
    %c0_212 = arith.constant 0 : index
    %c0_213 = arith.constant 0 : index
    %c26_214 = arith.constant 26 : index
    %447 = vector.load %arg3[%c0_212, %c0_213, %c26_214] : memref<1x8x32xf32, #tpu.memory_space<vmem>>, vector<1x8x1xf32>
    %448 = vector.shape_cast %447 : vector<1x8x1xf32> to vector<8x1xf32>
    %c0_215 = arith.constant 0 : index
    %c26_216 = arith.constant 26 : index
    %c0_217 = arith.constant 0 : index
    %449 = vector.load %arg4[%c0_215, %c26_216, %c0_217] : memref<1x32x8xf32, #tpu.memory_space<vmem>>, vector<1x1x8xf32>
    %450 = vector.shape_cast %449 : vector<1x1x8xf32> to vector<1x8xf32>
    %451 = vector.broadcast %446 : f32 to vector<8x8xf32>
    %452 = arith.mulf %2, %451 : vector<8x8xf32>
    %453 = vector.broadcast %448 : vector<8x1xf32> to vector<8x8xf32>
    %454 = arith.addf %452, %453 : vector<8x8xf32>
    %455 = vector.broadcast %450 : vector<1x8xf32> to vector<8x8xf32>
    %456 = arith.addf %454, %455 : vector<8x8xf32>
    %cst_218 = arith.constant 0.000000e+00 : f32
    %457 = vector.broadcast %cst_218 : f32 to vector<8x8xf32>
    %458 = arith.maximumf %456, %457 : vector<8x8xf32>
    %c26_219 = arith.constant 26 : index
    %459 = memref.load %arg7[%c26_219] : memref<32xf32, #tpu.memory_space<smem>>
    %460 = vector.broadcast %459 : f32 to vector<8x8xf32>
    %461 = arith.mulf %458, %460 : vector<8x8xf32>
    %462 = arith.addf %445, %461 : vector<8x8xf32>
    %c27 = arith.constant 27 : index
    %463 = memref.load %arg6[%c27] : memref<32xf32, #tpu.memory_space<smem>>
    %c0_220 = arith.constant 0 : index
    %c0_221 = arith.constant 0 : index
    %c27_222 = arith.constant 27 : index
    %464 = vector.load %arg3[%c0_220, %c0_221, %c27_222] : memref<1x8x32xf32, #tpu.memory_space<vmem>>, vector<1x8x1xf32>
    %465 = vector.shape_cast %464 : vector<1x8x1xf32> to vector<8x1xf32>
    %c0_223 = arith.constant 0 : index
    %c27_224 = arith.constant 27 : index
    %c0_225 = arith.constant 0 : index
    %466 = vector.load %arg4[%c0_223, %c27_224, %c0_225] : memref<1x32x8xf32, #tpu.memory_space<vmem>>, vector<1x1x8xf32>
    %467 = vector.shape_cast %466 : vector<1x1x8xf32> to vector<1x8xf32>
    %468 = vector.broadcast %463 : f32 to vector<8x8xf32>
    %469 = arith.mulf %2, %468 : vector<8x8xf32>
    %470 = vector.broadcast %465 : vector<8x1xf32> to vector<8x8xf32>
    %471 = arith.addf %469, %470 : vector<8x8xf32>
    %472 = vector.broadcast %467 : vector<1x8xf32> to vector<8x8xf32>
    %473 = arith.addf %471, %472 : vector<8x8xf32>
    %cst_226 = arith.constant 0.000000e+00 : f32
    %474 = vector.broadcast %cst_226 : f32 to vector<8x8xf32>
    %475 = arith.maximumf %473, %474 : vector<8x8xf32>
    %c27_227 = arith.constant 27 : index
    %476 = memref.load %arg7[%c27_227] : memref<32xf32, #tpu.memory_space<smem>>
    %477 = vector.broadcast %476 : f32 to vector<8x8xf32>
    %478 = arith.mulf %475, %477 : vector<8x8xf32>
    %479 = arith.addf %462, %478 : vector<8x8xf32>
    %c28 = arith.constant 28 : index
    %480 = memref.load %arg6[%c28] : memref<32xf32, #tpu.memory_space<smem>>
    %c0_228 = arith.constant 0 : index
    %c0_229 = arith.constant 0 : index
    %c28_230 = arith.constant 28 : index
    %481 = vector.load %arg3[%c0_228, %c0_229, %c28_230] : memref<1x8x32xf32, #tpu.memory_space<vmem>>, vector<1x8x1xf32>
    %482 = vector.shape_cast %481 : vector<1x8x1xf32> to vector<8x1xf32>
    %c0_231 = arith.constant 0 : index
    %c28_232 = arith.constant 28 : index
    %c0_233 = arith.constant 0 : index
    %483 = vector.load %arg4[%c0_231, %c28_232, %c0_233] : memref<1x32x8xf32, #tpu.memory_space<vmem>>, vector<1x1x8xf32>
    %484 = vector.shape_cast %483 : vector<1x1x8xf32> to vector<1x8xf32>
    %485 = vector.broadcast %480 : f32 to vector<8x8xf32>
    %486 = arith.mulf %2, %485 : vector<8x8xf32>
    %487 = vector.broadcast %482 : vector<8x1xf32> to vector<8x8xf32>
    %488 = arith.addf %486, %487 : vector<8x8xf32>
    %489 = vector.broadcast %484 : vector<1x8xf32> to vector<8x8xf32>
    %490 = arith.addf %488, %489 : vector<8x8xf32>
    %cst_234 = arith.constant 0.000000e+00 : f32
    %491 = vector.broadcast %cst_234 : f32 to vector<8x8xf32>
    %492 = arith.maximumf %490, %491 : vector<8x8xf32>
    %c28_235 = arith.constant 28 : index
    %493 = memref.load %arg7[%c28_235] : memref<32xf32, #tpu.memory_space<smem>>
    %494 = vector.broadcast %493 : f32 to vector<8x8xf32>
    %495 = arith.mulf %492, %494 : vector<8x8xf32>
    %496 = arith.addf %479, %495 : vector<8x8xf32>
    %c29 = arith.constant 29 : index
    %497 = memref.load %arg6[%c29] : memref<32xf32, #tpu.memory_space<smem>>
    %c0_236 = arith.constant 0 : index
    %c0_237 = arith.constant 0 : index
    %c29_238 = arith.constant 29 : index
    %498 = vector.load %arg3[%c0_236, %c0_237, %c29_238] : memref<1x8x32xf32, #tpu.memory_space<vmem>>, vector<1x8x1xf32>
    %499 = vector.shape_cast %498 : vector<1x8x1xf32> to vector<8x1xf32>
    %c0_239 = arith.constant 0 : index
    %c29_240 = arith.constant 29 : index
    %c0_241 = arith.constant 0 : index
    %500 = vector.load %arg4[%c0_239, %c29_240, %c0_241] : memref<1x32x8xf32, #tpu.memory_space<vmem>>, vector<1x1x8xf32>
    %501 = vector.shape_cast %500 : vector<1x1x8xf32> to vector<1x8xf32>
    %502 = vector.broadcast %497 : f32 to vector<8x8xf32>
    %503 = arith.mulf %2, %502 : vector<8x8xf32>
    %504 = vector.broadcast %499 : vector<8x1xf32> to vector<8x8xf32>
    %505 = arith.addf %503, %504 : vector<8x8xf32>
    %506 = vector.broadcast %501 : vector<1x8xf32> to vector<8x8xf32>
    %507 = arith.addf %505, %506 : vector<8x8xf32>
    %cst_242 = arith.constant 0.000000e+00 : f32
    %508 = vector.broadcast %cst_242 : f32 to vector<8x8xf32>
    %509 = arith.maximumf %507, %508 : vector<8x8xf32>
    %c29_243 = arith.constant 29 : index
    %510 = memref.load %arg7[%c29_243] : memref<32xf32, #tpu.memory_space<smem>>
    %511 = vector.broadcast %510 : f32 to vector<8x8xf32>
    %512 = arith.mulf %509, %511 : vector<8x8xf32>
    %513 = arith.addf %496, %512 : vector<8x8xf32>
    %c30 = arith.constant 30 : index
    %514 = memref.load %arg6[%c30] : memref<32xf32, #tpu.memory_space<smem>>
    %c0_244 = arith.constant 0 : index
    %c0_245 = arith.constant 0 : index
    %c30_246 = arith.constant 30 : index
    %515 = vector.load %arg3[%c0_244, %c0_245, %c30_246] : memref<1x8x32xf32, #tpu.memory_space<vmem>>, vector<1x8x1xf32>
    %516 = vector.shape_cast %515 : vector<1x8x1xf32> to vector<8x1xf32>
    %c0_247 = arith.constant 0 : index
    %c30_248 = arith.constant 30 : index
    %c0_249 = arith.constant 0 : index
    %517 = vector.load %arg4[%c0_247, %c30_248, %c0_249] : memref<1x32x8xf32, #tpu.memory_space<vmem>>, vector<1x1x8xf32>
    %518 = vector.shape_cast %517 : vector<1x1x8xf32> to vector<1x8xf32>
    %519 = vector.broadcast %514 : f32 to vector<8x8xf32>
    %520 = arith.mulf %2, %519 : vector<8x8xf32>
    %521 = vector.broadcast %516 : vector<8x1xf32> to vector<8x8xf32>
    %522 = arith.addf %520, %521 : vector<8x8xf32>
    %523 = vector.broadcast %518 : vector<1x8xf32> to vector<8x8xf32>
    %524 = arith.addf %522, %523 : vector<8x8xf32>
    %cst_250 = arith.constant 0.000000e+00 : f32
    %525 = vector.broadcast %cst_250 : f32 to vector<8x8xf32>
    %526 = arith.maximumf %524, %525 : vector<8x8xf32>
    %c30_251 = arith.constant 30 : index
    %527 = memref.load %arg7[%c30_251] : memref<32xf32, #tpu.memory_space<smem>>
    %528 = vector.broadcast %527 : f32 to vector<8x8xf32>
    %529 = arith.mulf %526, %528 : vector<8x8xf32>
    %530 = arith.addf %513, %529 : vector<8x8xf32>
    %c31 = arith.constant 31 : index
    %531 = memref.load %arg6[%c31] : memref<32xf32, #tpu.memory_space<smem>>
    %c0_252 = arith.constant 0 : index
    %c0_253 = arith.constant 0 : index
    %c31_254 = arith.constant 31 : index
    %532 = vector.load %arg3[%c0_252, %c0_253, %c31_254] : memref<1x8x32xf32, #tpu.memory_space<vmem>>, vector<1x8x1xf32>
    %533 = vector.shape_cast %532 : vector<1x8x1xf32> to vector<8x1xf32>
    %c0_255 = arith.constant 0 : index
    %c31_256 = arith.constant 31 : index
    %c0_257 = arith.constant 0 : index
    %534 = vector.load %arg4[%c0_255, %c31_256, %c0_257] : memref<1x32x8xf32, #tpu.memory_space<vmem>>, vector<1x1x8xf32>
    %535 = vector.shape_cast %534 : vector<1x1x8xf32> to vector<1x8xf32>
    %536 = vector.broadcast %531 : f32 to vector<8x8xf32>
    %537 = arith.mulf %2, %536 : vector<8x8xf32>
    %538 = vector.broadcast %533 : vector<8x1xf32> to vector<8x8xf32>
    %539 = arith.addf %537, %538 : vector<8x8xf32>
    %540 = vector.broadcast %535 : vector<1x8xf32> to vector<8x8xf32>
    %541 = arith.addf %539, %540 : vector<8x8xf32>
    %cst_258 = arith.constant 0.000000e+00 : f32
    %542 = vector.broadcast %cst_258 : f32 to vector<8x8xf32>
    %543 = arith.maximumf %541, %542 : vector<8x8xf32>
    %c31_259 = arith.constant 31 : index
    %544 = memref.load %arg7[%c31_259] : memref<32xf32, #tpu.memory_space<smem>>
    %545 = vector.broadcast %544 : f32 to vector<8x8xf32>
    %546 = arith.mulf %543, %545 : vector<8x8xf32>
    %547 = arith.addf %530, %546 : vector<8x8xf32>
    %548 = vector.broadcast %0 : f32 to vector<8x8xf32>
    %549 = arith.addf %547, %548 : vector<8x8xf32>
    %cst_260 = arith.constant 0.000000e+00 : f32
    %550 = vector.broadcast %cst_260 : f32 to vector<8x8xf32>
    %551 = arith.subf %550, %549 : vector<8x8xf32>
    %552 = math.exp %551 : vector<8x8xf32>
    %cst_261 = arith.constant 1.000000e+00 : f32
    %553 = vector.broadcast %cst_261 : f32 to vector<8x8xf32>
    %554 = arith.addf %553, %552 : vector<8x8xf32>
    %555 = tpu.reciprocal %554 {approx = true} : vector<8x8xf32> -> vector<8x8xf32>
    %c0_262 = arith.constant 0 : index
    %c0_263 = arith.constant 0 : index
    %c0_264 = arith.constant 0 : index
    %556 = vector.load %arg9[%c0_262, %c0_263, %c0_264] : memref<1x8x8xf32, #tpu.memory_space<vmem>>, vector<1x8x8xf32>
    %557 = vector.shape_cast %556 : vector<1x8x8xf32> to vector<8x8xf32>
    %558 = vector.shape_cast %555 : vector<8x8xf32> to vector<1x8x8xf32>
    tpu.vector_store %arg9[%c0_262, %c0_263, %c0_264], %558 {strides = array<i32>} : memref<1x8x8xf32, #tpu.memory_space<vmem>>, vector<1x8x8xf32>,
    return
  }
  func.func @transform_0(%arg0: i32, %arg1: i32, %arg2: i32) -> (i32, i32, i32) {
    %c0_i32 = arith.constant 0 : i32
    %c0_i32_0 = arith.constant 0 : i32
    return %arg0, %arg1, %c0_i32 : i32, i32, i32
  }
  func.func @transform_1(%arg0: i32, %arg1: i32, %arg2: i32) -> (i32, i32, i32) {
    %c0_i32 = arith.constant 0 : i32
    %c0_i32_0 = arith.constant 0 : i32
    return %arg0, %c0_i32, %arg2 : i32, i32, i32
  }
  func.func @transform_2(%arg0: i32, %arg1: i32, %arg2: i32) -> (i32, i32, i32) {
    %c0_i32 = arith.constant 0 : i32
    return %arg0, %arg1, %arg2 : i32, i32, i32
  }
  func.func @transform_3(%arg0: i32, %arg1: i32, %arg2: i32) -> i32 {
    %c0_i32 = arith.constant 0 : i32
    %c0_i32_0 = arith.constant 0 : i32
    return %c0_i32 : i32
  }
  func.func @transform_4(%arg0: i32, %arg1: i32, %arg2: i32) -> i32 {
    %c0_i32 = arith.constant 0 : i32
    %c0_i32_0 = arith.constant 0 : i32
    return %c0_i32 : i32
  }
  func.func @transform_5(%arg0: i32, %arg1: i32, %arg2: i32) -> i32 {
    %c0_i32 = arith.constant 0 : i32
    %c0_i32_0 = arith.constant 0 : i32
    return %c0_i32 : i32
  }
  func.func @transform_6(%arg0: i32, %arg1: i32, %arg2: i32) -> (i32, i32, i32) {
    %c0_i32 = arith.constant 0 : i32
    return %arg0, %arg1, %arg2 : i32, i32, i32
  }
}

</mosaic_0001>

<llo_original>
// kernel: mlp_adjacency.1
$region0: #{mlp_adjacency.1}
  #allocation0 [shape = 'u32[]', space=smem, size = 0x4, offset = 0x4, fixed_abs, tag = 'smem constant byte address 0x4 - core index']
  #allocation1 [shape = 'u32[144,128]{1,0:T(1,128)}', space=vmem, size = 0x12000, scoped, tag = 'internal scratch']
  #allocation2 [shape = 'f32[1]{0:T(128)S(6)}', space=smem, size = 0x200, scoped, tag = 'scoped memory for mlp_adjacency.1']
  %s0 = inlined_call_operand.vmem [shape: f32[2,8,32], index: 0, kind: input, shape index: {}]
  %s1 = inlined_call_operand.vmem [shape: f32[2,32,8], index: 1, kind: input, shape index: {}]
  %s2 = inlined_call_operand.vmem [shape: f32[2,8,8], index: 2, kind: input, shape index: {}]
  %s3 = inlined_call_operand.vmem [shape: f32[32], index: 3, kind: input, shape index: {}]
  %s4 = inlined_call_operand.vmem [shape: f32[32], index: 4, kind: input, shape index: {}]
  %s5 = inlined_call_operand.<no memory space> [shape: f32[1], index: 5, kind: input, shape index: {}]
  %s6 = inlined_call_operand.hbm [shape: f32[2,8,8], index: 6, kind: output, shape index: {}]
  %s7 = sld [smem:[#allocation0]]
  $region65: #{mlp_adjacency.1} parent=0
    _
  %s9 = ssub.s32 1, %s7
  %s10 = scalar_select 0, %s9, %s7
  %11 = sst [smem:[#allocation2]] %s5
  $region1: #{mlp_adjacency.1} parent=0
    #allocation3 [shape = 'u8[512]{0}', space=smem, size = 0x200, scoped, tag = 'input window, operand 3, single buffered']
    #allocation4 [shape = 's32[2]{0}', space=sflag, size = 0x8, scoped, tag = 'scoped memory for mlp_adjacency.1']
    #allocation5 [shape = 's32[2]{0}', space=sflag, size = 0x8, scoped, tag = 'scoped memory for mlp_adjacency.1']
    #allocation6 [shape = 'u8[512]{0}', space=smem, size = 0x200, scoped, tag = 'input window, operand 4, single buffered']
    #allocation7 [shape = 's32[1]{0}', space=sflag, size = 0x4, scoped, tag = 'scoped memory for mlp_adjacency.1']
    #allocation8 [shape = 'u8[8192]{0}', space=vmem, size = 0x2000, scoped, tag = 'output window, operand 0']
    %12 = vsyncpa [#allocation5], 0
    %13 = vsyncpa [#allocation7], 0
    %14 = vsyncpa [#allocation4], 0
    %s15 = scalar_lea.sflag [#allocation4], 1
    %16 = vsyncpa %s15, 0
    loop: start=0, step=1, limit=4
    $region2: #{mlp_adjacency.1} parent=1 // loop_pre_header
      _
    $region3: #{mlp_adjacency.1} parent=1 // loop_header
      %s18 = sphi 0, %s22
      %p19 = scmp.ge.s32.totalorder %s18, 4
      %s25 = sphi 0, %s44
      %s26 = sphi 0, %s40
      %s27 = sphi 0, %s36
      %s28 = sphi 0, %s25
      %s29 = sphi 0, %s26
      %s30 = sphi 0, %s27
      %s31 = sphi 0, %s28
      %s32 = sphi 0, %s29
      %s33 = sphi 0, %s30
      %s49 = sphi 0, %s51
      %s52 = sphi 0, %s49
      %s53 = sphi 0, %s52
      %s69 = sphi 0, %s53
      %s77 = sphi 0, %s79
      %s80 = sphi 0, %s77
      %s81 = sphi 0, %s80
      %s97 = sphi 0, %s81
      %s107 = sphi 0, %s109
      %s110 = sphi 0, %s107
      %s111 = sphi 0, %s110
      %s127 = sphi 0, %s111
      %s131 = sphi 0, %s131
      %s133 = sphi 0, %s131
      %s134 = sphi 0, %s133
      %s148 = sphi 0, %s134
      %s152 = sphi 0, %s152
      %s154 = sphi 0, %s152
      %s155 = sphi 0, %s154
      %s169 = sphi 0, %s155
      %s173 = sphi 0, %s173
      %s175 = sphi 0, %s173
      %s176 = sphi 0, %s175
      %s190 = sphi 0, %s176
      %s200 = sphi 0, %s202
      %s203 = sphi 0, %s200
      %s204 = sphi 0, %s203
      %s220 = sphi 0, %s204
    $region4: #{mlp_adjacency.1} parent=1 // loop_header_branch
      %21 = sbr.rel (%p19) target = $region8
    $region5: #{mlp_adjacency.1} parent=1 // loop_body
      %s23 = ssub.s32 %s18, 1
      %s24 = ssub.s32 %s18, 2
      %s34 = sadd.s32 1, %s27
      %p35 = scmp.ge.s32.totalorder %s34, 1
      %s36 = scalar_select %p35, 0, %s34
      %s37 = sadd.s32 1, %s26
      %s38 = scalar_select %p35, %s37, %s26
      %p39 = scmp.ge.s32.totalorder %s38, 1
      %s40 = scalar_select %p39, 0, %s38
      %s41 = sadd.s32 1, %s25
      %s42 = scalar_select %p39, %s41, %s25
      %p43 = scmp.ge.s32.totalorder %s42, 2
      %s44 = scalar_select %p43, 0, %s42
      %s45 = ssub.s32 %s25, %s44
      %s46 = ssub.s32 %s26, %s40
      %s47 = sor.u32 %s45, %s46
      %p48 = scmp.eq.s32.totalorder %s47, 0
      %s50 = sadd.s32 %s49, 1
      %s51 = scalar_select %p48, %s49, %s50
      %p54 = pneg %p48
      %p55 = scmp.eq.s32.totalorder %s18, 1
      %p56 = por %p54, %p55
      %p57 = scmp.ne.s32.totalorder %s49, %s52
      %p58 = scmp.eq.s32.totalorder %s18, 0
      %p59 = por %p57, %p58
      %p60 = scmp.ne.s32.totalorder %s49, %s52
      %p61 = scmp.eq.s32.totalorder %s23, 1
      %p62 = por %p60, %p61
      %p63 = scmp.ne.s32.totalorder %s52, %s53
      %p64 = scmp.eq.s32.totalorder %s23, 0
      %p65 = por %p63, %p64
      %p66 = scmp.ne.s32.totalorder %s52, %s53
      %p67 = scmp.eq.s32.totalorder %s24, 1
      %p68 = por %p66, %p67
      %p70 = scmp.ne.s32.totalorder %s53, %s69
      %p71 = scmp.eq.s32.totalorder %s24, 0
      %p72 = por %p70, %p71
      %s73 = ssub.s32 %s25, %s44
      %s74 = ssub.s32 %s27, %s36
      %s75 = sor.u32 %s73, %s74
      %p76 = scmp.eq.s32.totalorder %s75, 0
      %s78 = sadd.s32 %s77, 1
      %s79 = scalar_select %p76, %s77, %s78
      %p82 = pneg %p76
      %p83 = scmp.eq.s32.totalorder %s18, 1
      %p84 = por %p82, %p83
      %p85 = scmp.ne.s32.totalorder %s77, %s80
      %p86 = scmp.eq.s32.totalorder %s18, 0
      %p87 = por %p85, %p86
      %p88 = scmp.ne.s32.totalorder %s77, %s80
      %p89 = scmp.eq.s32.totalorder %s23, 1
      %p90 = por %p88, %p89
      %p91 = scmp.ne.s32.totalorder %s80, %s81
      %p92 = scmp.eq.s32.totalorder %s23, 0
      %p93 = por %p91, %p92
      %p94 = scmp.ne.s32.totalorder %s80, %s81
      %p95 = scmp.eq.s32.totalorder %s24, 1
      %p96 = por %p94, %p95
      %p98 = scmp.ne.s32.totalorder %s81, %s97
      %p99 = scmp.eq.s32.totalorder %s24, 0
      %p100 = por %p98, %p99
      %s101 = ssub.s32 %s25, %s44
      %s102 = ssub.s32 %s26, %s40
      %s103 = sor.u32 %s101, %s102
      %s104 = ssub.s32 %s27, %s36
      %s105 = sor.u32 %s103, %s104
      %p106 = scmp.eq.s32.totalorder %s105, 0
      %s108 = sadd.s32 %s107, 1
      %s109 = scalar_select %p106, %s107, %s108
      %p112 = pneg %p106
      %p113 = scmp.eq.s32.totalorder %s18, 1
      %p114 = por %p112, %p113
      %p115 = scmp.ne.s32.totalorder %s107, %s110
      %p116 = scmp.eq.s32.totalorder %s18, 0
      %p117 = por %p115, %p116
      %p118 = scmp.ne.s32.totalorder %s107, %s110
      %p119 = scmp.eq.s32.totalorder %s23, 1
      %p120 = por %p118, %p119
      %p121 = scmp.ne.s32.totalorder %s110, %s111
      %p122 = scmp.eq.s32.totalorder %s23, 0
      %p123 = por %p121, %p122
      %p124 = scmp.ne.s32.totalorder %s110, %s111
      %p125 = scmp.eq.s32.totalorder %s24, 1
      %p126 = por %p124, %p125
      %p128 = scmp.ne.s32.totalorder %s111, %s127
      %p129 = scmp.eq.s32.totalorder %s24, 0
      %p130 = por %p128, %p129
      %s132 = sadd.s32 %s131, 1
      %p135 = scmp.eq.s32.totalorder %s18, 1
      %p136 = scmp.ne.s32.totalorder %s131, %s133
      %p137 = scmp.eq.s32.totalorder %s18, 0
      %p138 = por %p136, %p137
      %p139 = scmp.ne.s32.totalorder %s131, %s133
      %p140 = scmp.eq.s32.totalorder %s23, 1
      %p141 = por %p139, %p140
      %p142 = scmp.ne.s32.totalorder %s133, %s134
      %p143 = scmp.eq.s32.totalorder %s23, 0
      %p144 = por %p142, %p143
      %p145 = scmp.ne.s32.totalorder %s133, %s134
      %p146 = scmp.eq.s32.totalorder %s24, 1
      %p147 = por %p145, %p146
      %p149 = scmp.ne.s32.totalorder %s134, %s148
      %p150 = scmp.eq.s32.totalorder %s24, 0
      %p151 = por %p149, %p150
      %s153 = sadd.s32 %s152, 1
      %p156 = scmp.eq.s32.totalorder %s18, 1
      %p157 = scmp.ne.s32.totalorder %s152, %s154
      %p158 = scmp.eq.s32.totalorder %s18, 0
      %p159 = por %p157, %p158
      %p160 = scmp.ne.s32.totalorder %s152, %s154
      %p161 = scmp.eq.s32.totalorder %s23, 1
      %p162 = por %p160, %p161
      %p163 = scmp.ne.s32.totalorder %s154, %s155
      %p164 = scmp.eq.s32.totalorder %s23, 0
      %p165 = por %p163, %p164
      %p166 = scmp.ne.s32.totalorder %s154, %s155
      %p167 = scmp.eq.s32.totalorder %s24, 1
      %p168 = por %p166, %p167
      %p170 = scmp.ne.s32.totalorder %s155, %s169
      %p171 = scmp.eq.s32.totalorder %s24, 0
      %p172 = por %p170, %p171
      %s174 = sadd.s32 %s173, 1
      %p177 = scmp.eq.s32.totalorder %s18, 1
      %p178 = scmp.ne.s32.totalorder %s173, %s175
      %p179 = scmp.eq.s32.totalorder %s18, 0
      %p180 = por %p178, %p179
      %p181 = scmp.ne.s32.totalorder %s173, %s175
      %p182 = scmp.eq.s32.totalorder %s23, 1
      %p183 = por %p181, %p182
      %p184 = scmp.ne.s32.totalorder %s175, %s176
      %p185 = scmp.eq.s32.totalorder %s23, 0
      %p186 = por %p184, %p185
      %p187 = scmp.ne.s32.totalorder %s175, %s176
      %p188 = scmp.eq.s32.totalorder %s24, 1
      %p189 = por %p187, %p188
      %p191 = scmp.ne.s32.totalorder %s176, %s190
      %p192 = scmp.eq.s32.totalorder %s24, 0
      %p193 = por %p191, %p192
      %s194 = ssub.s32 %s25, %s44
      %s195 = ssub.s32 %s26, %s40
      %s196 = sor.u32 %s194, %s195
      %s197 = ssub.s32 %s27, %s36
      %s198 = sor.u32 %s196, %s197
      %p199 = scmp.eq.s32.totalorder %s198, 0
      %s201 = sadd.s32 %s200, 1
      %s202 = scalar_select %p199, %s200, %s201
      %p205 = pneg %p199
      %p206 = scmp.eq.s32.totalorder %s18, 1
      %p207 = por %p205, %p206
      %p208 = scmp.ne.s32.totalorder %s200, %s203
      %p209 = scmp.eq.s32.totalorder %s18, 0
      %p210 = por %p208, %p209
      %p211 = scmp.ne.s32.totalorder %s200, %s203
      %p212 = scmp.eq.s32.totalorder %s23, 1
      %p213 = por %p211, %p212
      %p214 = scmp.ne.s32.totalorder %s203, %s204
      %p215 = scmp.eq.s32.totalorder %s23, 0
      %p216 = por %p214, %p215
      %p217 = scmp.ne.s32.totalorder %s203, %s204
      %p218 = scmp.eq.s32.totalorder %s24, 1
      %p219 = por %p217, %p218
      %p221 = scmp.ne.s32.totalorder %s204, %s220
      %p222 = scmp.eq.s32.totalorder %s24, 0
      %p223 = por %p221, %p222
      %p224 = scmp.le.s32.totalorder 1, %s18
      %p225 = scmp.lt.s32.totalorder %s18, 3
      %p226 = pnand %p224, %p225
      %p227 = pneg %p226
      // Predicated region
      $region9: #{mlp_adjacency.1} parent=5 // pred_check
        _
      $region10: #{mlp_adjacency.1} parent=5 // pred_check_branch
        %229 = sbr.rel (%p226) target = $region12
      $region11: #{mlp_adjacency.1} parent=5 // pred_region
        %s230 = ssub.s32 %s18, 1
        // Predicated region
        $region13: #{mlp_adjacency.1} parent=11 // pred_check
          %p231 = pneg %p144
        $region14: #{mlp_adjacency.1} parent=11 // pred_check_branch
          %233 = sbr.rel (%p231) target = $region16
        $region15: #{mlp_adjacency.1} parent=11 // pred_region
          %s235 = ssub.s32 16, 16
          %236 = vsyncadd [#allocation5], %s235
          %s238 = sshll.u32 %s3, 4
          %s239 = int_to_ptr.vmem [resolvable:$true] %s238
          %241 = dma.vmem_to_smem %s239, 16, [#allocation3], [#allocation5]
        $region16: #{mlp_adjacency.1} parent=11 // pred_fallthru
          _
        // Predicated region
        $region17: #{mlp_adjacency.1} parent=11 // pred_check
          %p242 = pneg %p165
        $region18: #{mlp_adjacency.1} parent=11 // pred_check_branch
          %244 = sbr.rel (%p242) target = $region20
        $region19: #{mlp_adjacency.1} parent=11 // pred_region
          %s246 = ssub.s32 16, 16
          %247 = vsyncadd [#allocation7], %s246
          %s249 = sshll.u32 %s4, 4
          %s250 = int_to_ptr.vmem [resolvable:$true] %s249
          %252 = dma.vmem_to_smem %s250, 16, [#allocation6], [#allocation7]
        $region20: #{mlp_adjacency.1} parent=11 // pred_fallthru
          _
        // Predicated region
        $region21: #{mlp_adjacency.1} parent=11 // pred_check
          %p253 = pneg %p186
        $region22: #{mlp_adjacency.1} parent=11 // pred_check_branch
          %255 = sbr.rel (%p253) target = $region24
        $region23: #{mlp_adjacency.1} parent=11 // pred_region
          _
        $region24: #{mlp_adjacency.1} parent=11 // pred_fallthru
          _
      $region12: #{mlp_adjacency.1} parent=5 // pred_fallthru
        _
      %p256 = scmp.lt.s32.totalorder %s18, 2
      // Predicated region
      $region25: #{mlp_adjacency.1} parent=5 // pred_check
        %p257 = pneg %p256
      $region26: #{mlp_adjacency.1} parent=5 // pred_check_branch
        %259 = sbr.rel (%p257) target = $region28
      $region27: #{mlp_adjacency.1} parent=5 // pred_region
        // Predicated region
        $region29: #{mlp_adjacency.1} parent=27 // pred_check
          %p260 = pneg %p59
        $region30: #{mlp_adjacency.1} parent=27 // pred_check_branch
          %262 = sbr.rel (%p260) target = $region32
        $region31: #{mlp_adjacency.1} parent=27 // pred_region
          %p263 = scmp.lt.s32.totalorder %s25, 1
          %s264 = scalar_select %p263, %s25, 1
          %p265 = scmp.lt.s32.totalorder %s26, 0
          %s266 = scalar_select %p265, %s26, 0
          %s267 = sadd.s32 %s266, %s264
          %s268 = smul.addr %s267, 8
          %s269 = scalar_lea.vmem %s0, %s268
        $region32: #{mlp_adjacency.1} parent=27 // pred_fallthru
          _
        // Predicated region
        $region33: #{mlp_adjacency.1} parent=27 // pred_check
          %p270 = pneg %p87
        $region34: #{mlp_adjacency.1} parent=27 // pred_check_branch
          %272 = sbr.rel (%p270) target = $region36
        $region35: #{mlp_adjacency.1} parent=27 // pred_region
          %p273 = scmp.lt.s32.totalorder %s25, 1
          %s274 = scalar_select %p273, %s25, 1
          %p275 = scmp.lt.s32.totalorder %s27, 0
          %s276 = scalar_select %p275, %s27, 0
          %s277 = smul.addr %s274, 4
          %s278 = sadd.s32 %s276, %s277
          %s279 = smul.addr %s278, 8
          %s280 = scalar_lea.vmem %s1, %s279
        $region36: #{mlp_adjacency.1} parent=27 // pred_fallthru
          _
        // Predicated region
        $region37: #{mlp_adjacency.1} parent=27 // pred_check
          %p281 = pneg %p117
        $region38: #{mlp_adjacency.1} parent=27 // pred_check_branch
          %283 = sbr.rel (%p281) target = $region40
        $region39: #{mlp_adjacency.1} parent=27 // pred_region
          %p284 = scmp.lt.s32.totalorder %s25, 1
          %s285 = scalar_select %p284, %s25, 1
          %p286 = scmp.lt.s32.totalorder %s26, 0
          %s287 = scalar_select %p286, %s26, 0
          %p288 = scmp.lt.s32.totalorder %s27, 0
          %s289 = scalar_select %p288, %s27, 0
          %s290 = sadd.s32 %s289, %s287
          %s291 = sadd.s32 %s290, %s285
          %s292 = smul.addr %s291, 8
          %s293 = scalar_lea.vmem %s2, %s292
        $region40: #{mlp_adjacency.1} parent=27 // pred_fallthru
          _
      $region28: #{mlp_adjacency.1} parent=5 // pred_fallthru
        _
      %p294 = scmp.le.s32.totalorder 1, %s18
      %p295 = scmp.lt.s32.totalorder %s18, 3
      %p296 = pnand %p294, %p295
      %p297 = pneg %p296
      // Predicated region
      $region41: #{mlp_adjacency.1} parent=5 // pred_check
        _
      $region42: #{mlp_adjacency.1} parent=5 // pred_check_branch
        %299 = sbr.rel (%p296) target = $region44
      $region43: #{mlp_adjacency.1} parent=5 // pred_region
        %s300 = ssub.s32 %s18, 1
        // Predicated region
        $region45: #{mlp_adjacency.1} parent=43 // pred_check
          %p301 = pneg %p144
        $region46: #{mlp_adjacency.1} parent=43 // pred_check_branch
          %303 = sbr.rel (%p301) target = $region48
        $region47: #{mlp_adjacency.1} parent=43 // pred_region
          %304 = dma.done [#allocation5], 16
        $region48: #{mlp_adjacency.1} parent=43 // pred_fallthru
          _
        // Predicated region
        $region49: #{mlp_adjacency.1} parent=43 // pred_check
          %p305 = pneg %p165
        $region50: #{mlp_adjacency.1} parent=43 // pred_check_branch
          %307 = sbr.rel (%p305) target = $region52
        $region51: #{mlp_adjacency.1} parent=43 // pred_region
          %308 = dma.done [#allocation7], 16
        $region52: #{mlp_adjacency.1} parent=43 // pred_fallthru
          _
        %309 = sfence
        %p310 = scmp.lt.s32.totalorder %s28, 1
        %s311 = scalar_select %p310, %s28, 1
        %p312 = scmp.lt.s32.totalorder %s29, 0
        %s313 = scalar_select %p312, %s29, 0
        %s314 = sadd.s32 %s313, %s311
        %s315 = smul.addr %s314, 8
        %s316 = scalar_lea.vmem %s0, %s315
        %p317 = pneg %p65
        %p318 = pneg %p62
        %p319 = scmp.lt.s32.totalorder %s28, 1
        %s320 = scalar_select %p319, %s28, 1
        %p321 = scmp.lt.s32.totalorder %s30, 0
        %s322 = scalar_select %p321, %s30, 0
        %s323 = smul.addr %s320, 4
        %s324 = sadd.s32 %s322, %s323
        %s325 = smul.addr %s324, 8
        %s326 = scalar_lea.vmem %s1, %s325
        %p327 = pneg %p93
        %p328 = pneg %p90
        %p329 = scmp.lt.s32.totalorder %s28, 1
        %s330 = scalar_select %p329, %s28, 1
        %p331 = scmp.lt.s32.totalorder %s29, 0
        %s332 = scalar_select %p331, %s29, 0
        %p333 = scmp.lt.s32.totalorder %s30, 0
        %s334 = scalar_select %p333, %s30, 0
        %s335 = sadd.s32 %s334, %s332
        %s336 = sadd.s32 %s335, %s330
        %s337 = smul.addr %s336, 8
        %s338 = scalar_lea.vmem %s2, %s337
        %p339 = pneg %p123
        %p340 = pneg %p120
        %p341 = pneg %p144
        %p342 = pneg %p141
        %p343 = pneg %p165
        %p344 = pneg %p162
        %p345 = pneg %p186
        %p346 = pneg %p183
        %p347 = pneg %p216
        %p348 = pneg %p213
        %s349 = sand.u32 %s203, 1
        %s350 = scalar_lea.sflag [#allocation4], %s349
        %s351 = sand.u32 %s203, 1
        %s352 = smul.addr %s351, 8
        %s353 = scalar_lea.vmem [#allocation8], %s352
        %p354 = scmp.lt.s32.totalorder %s28, 1
        %s355 = scalar_select %p354, %s28, 1
        %p356 = scmp.lt.s32.totalorder %s29, 0
        %s357 = scalar_select %p356, %s29, 0
        %s358 = sadd.s32 %s357, %s355
        %s359 = smul.addr %s358, 8
        %s360 = scalar_lea.vmem %s0, %s359
        %p361 = scmp.lt.s32.totalorder %s28, 1
        %s362 = scalar_select %p361, %s28, 1
        %p363 = scmp.lt.s32.totalorder %s30, 0
        %s364 = scalar_select %p363, %s30, 0
        %s365 = smul.addr %s362, 4
        %s366 = sadd.s32 %s364, %s365
        %s367 = smul.addr %s366, 8
        %s368 = scalar_lea.vmem %s1, %s367
        %p369 = scmp.lt.s32.totalorder %s28, 1
        %s370 = scalar_select %p369, %s28, 1
        %p371 = scmp.lt.s32.totalorder %s29, 0
        %s372 = scalar_select %p371, %s29, 0
        %p373 = scmp.lt.s32.totalorder %s30, 0
        %s374 = scalar_select %p373, %s30, 0
        %s375 = sadd.s32 %s374, %s372
        %s376 = sadd.s32 %s375, %s370
        %s377 = smul.addr %s376, 8
        %s378 = scalar_lea.vmem %s2, %s377
        %s379 = sld [smem:[#allocation2]]
        %v380 = vld [vmem:[%s378] sm:$0xff]
        %s381 = sld [smem:[#allocation3]]
        %v382 = vld [vmem:[%s360] sm:$0xff]
        %v383 = vld [vmem:[%s368] sm:$0x1]
        %v384 = vstv %s381
        %v385 = vmul.f32 %v380, %v384
        %387 = vset.pattern.permute.xlu0 0
        %388 = vperm.xlu0 %387, %v382
        %v389 = vpop.permute.xlu0 %388
        %v391 = vadd.f32 %v385, %v389
        %v392 = vlaneseq
        %v393 = vshrl.u32 %v392, 7
        %v394 = vsub.s32 0, %v393
        %v395 = vrot.slane %v383, %v394
        %v396 = vadd.f32 %v391, %v395
        %v397 = vmax.f32 %v396, 0.0
        %s398 = sld [smem:[#allocation6]]
        %v399 = vstv %s398
        %v400 = vmul.f32 %v397, %v399
        %v401 = vadd.f32 %v400, 0.0
        %s402 = sld [smem:[#allocation3 + $0x1]]
        %v403 = vld [vmem:[%s368 + $0x1] sm:$0x1]
        %v404 = vstv %s402
        %v405 = vmul.f32 %v380, %v404
        %406 = vset.pattern.permute.xlu0 1
        %407 = vperm.xlu0 %406, %v382
        %v408 = vpop.permute.xlu0 %407
        %v410 = vadd.f32 %v405, %v408
        %v411 = vlaneseq
        %v412 = vshrl.u32 %v411, 7
        %v413 = vsub.s32 0, %v412
        %v414 = vrot.slane %v403, %v413
        %v415 = vadd.f32 %v410, %v414
        %v416 = vmax.f32 %v415, 0.0
        %s417 = sld [smem:[#allocation6 + $0x1]]
        %v418 = vstv %s417
        %v419 = vmul.f32 %v416, %v418
        %v420 = vadd.f32 %v401, %v419
        %s421 = sld [smem:[#allocation3 + $0x2]]
        %v422 = vld [vmem:[%s368 + $0x2] sm:$0x1]
        %v423 = vstv %s421
        %v424 = vmul.f32 %v380, %v423
        %425 = vset.pattern.permute.xlu0 2
        %426 = vperm.xlu0 %425, %v382
        %v427 = vpop.permute.xlu0 %426
        %v429 = vadd.f32 %v424, %v427
        %v430 = vlaneseq
        %v431 = vshrl.u32 %v430, 7
        %v432 = vsub.s32 0, %v431
        %v433 = vrot.slane %v422, %v432
        %v434 = vadd.f32 %v429, %v433
        %v435 = vmax.f32 %v434, 0.0
        %s436 = sld [smem:[#allocation6 + $0x2]]
        %v437 = vstv %s436
        %v438 = vmul.f32 %v435, %v437
        %v439 = vadd.f32 %v420, %v438
        %s440 = sld [smem:[#allocation3 + $0x3]]
        %v441 = vld [vmem:[%s368 + $0x3] sm:$0x1]
        %v442 = vstv %s440
        %v443 = vmul.f32 %v380, %v442
        %444 = vset.pattern.permute.xlu0 3
        %445 = vperm.xlu0 %444, %v382
        %v446 = vpop.permute.xlu0 %445
        %v448 = vadd.f32 %v443, %v446
        %v449 = vlaneseq
        %v450 = vshrl.u32 %v449, 7
        %v451 = vsub.s32 0, %v450
        %v452 = vrot.slane %v441, %v451
        %v453 = vadd.f32 %v448, %v452
        %v454 = vmax.f32 %v453, 0.0
        %s455 = sld [smem:[#allocation6 + $0x3]]
        %v456 = vstv %s455
        %v457 = vmul.f32 %v454, %v456
        %v458 = vadd.f32 %v439, %v457
        %s459 = sld [smem:[#allocation3 + $0x4]]
        %v460 = vld [vmem:[%s368 + $0x4] sm:$0x1]
        %v461 = vstv %s459
        %v462 = vmul.f32 %v380, %v461
        %463 = vset.pattern.permute.xlu0 4
        %464 = vperm.xlu0 %463, %v382
        %v465 = vpop.permute.xlu0 %464
        %v467 = vadd.f32 %v462, %v465
        %v468 = vlaneseq
        %v469 = vshrl.u32 %v468, 7
        %v470 = vsub.s32 0, %v469
        %v471 = vrot.slane %v460, %v470
        %v472 = vadd.f32 %v467, %v471
        %v473 = vmax.f32 %v472, 0.0
        %s474 = sld [smem:[#allocation6 + $0x4]]
        %v475 = vstv %s474
        %v476 = vmul.f32 %v473, %v475
        %v477 = vadd.f32 %v458, %v476
        %s478 = sld [smem:[#allocation3 + $0x5]]
        %v479 = vld [vmem:[%s368 + $0x5] sm:$0x1]
        %v480 = vstv %s478
        %v481 = vmul.f32 %v380, %v480
        %482 = vset.pattern.permute.xlu0 5
        %483 = vperm.xlu0 %482, %v382
        %v484 = vpop.permute.xlu0 %483
        %v486 = vadd.f32 %v481, %v484
        %v487 = vlaneseq
        %v488 = vshrl.u32 %v487, 7
        %v489 = vsub.s32 0, %v488
        %v490 = vrot.slane %v479, %v489
        %v491 = vadd.f32 %v486, %v490
        %v492 = vmax.f32 %v491, 0.0
        %s493 = sld [smem:[#allocation6 + $0x5]]
        %v494 = vstv %s493
        %v495 = vmul.f32 %v492, %v494
        %v496 = vadd.f32 %v477, %v495
        %s497 = sld [smem:[#allocation3 + $0x6]]
        %v498 = vld [vmem:[%s368 + $0x6] sm:$0x1]
        %v499 = vstv %s497
        %v500 = vmul.f32 %v380, %v499
        %501 = vset.pattern.permute.xlu0 6
        %502 = vperm.xlu0 %501, %v382
        %v503 = vpop.permute.xlu0 %502
        %v505 = vadd.f32 %v500, %v503
        %v506 = vlaneseq
        %v507 = vshrl.u32 %v506, 7
        %v508 = vsub.s32 0, %v507
        %v509 = vrot.slane %v498, %v508
        %v510 = vadd.f32 %v505, %v509
        %v511 = vmax.f32 %v510, 0.0
        %s512 = sld [smem:[#allocation6 + $0x6]]
        %v513 = vstv %s512
        %v514 = vmul.f32 %v511, %v513
        %v515 = vadd.f32 %v496, %v514
        %s516 = sld [smem:[#allocation3 + $0x7]]
        %v517 = vld [vmem:[%s368 + $0x7] sm:$0x1]
        %v518 = vstv %s516
        %v519 = vmul.f32 %v380, %v518
        %520 = vset.pattern.permute.xlu0 7
        %521 = vperm.xlu0 %520, %v382
        %v522 = vpop.permute.xlu0 %521
        %v524 = vadd.f32 %v519, %v522
        %v525 = vlaneseq
        %v526 = vshrl.u32 %v525, 7
        %v527 = vsub.s32 0, %v526
        %v528 = vrot.slane %v517, %v527
        %v529 = vadd.f32 %v524, %v528
        %v530 = vmax.f32 %v529, 0.0
        %s531 = sld [smem:[#allocation6 + $0x7]]
        %v532 = vstv %s531
        %v533 = vmul.f32 %v530, %v532
        %v534 = vadd.f32 %v515, %v533
        %s535 = sld [smem:[#allocation3 + $0x8]]
        %v536 = vld [vmem:[%s368 + $0x8] sm:$0x1]
        %v537 = vstv %s535
        %v538 = vmul.f32 %v380, %v537
        %539 = vset.pattern.permute.xlu0 8
        %540 = vperm.xlu0 %539, %v382
        %v541 = vpop.permute.xlu0 %540
        %v543 = vadd.f32 %v538, %v541
        %v544 = vlaneseq
        %v545 = vshrl.u32 %v544, 7
        %v546 = vsub.s32 0, %v545
        %v547 = vrot.slane %v536, %v546
        %v548 = vadd.f32 %v543, %v547
        %v549 = vmax.f32 %v548, 0.0
        %s550 = sld [smem:[#allocation6 + $0x8]]
        %v551 = vstv %s550
        %v552 = vmul.f32 %v549, %v551
        %v553 = vadd.f32 %v534, %v552
        %s554 = sld [smem:[#allocation3 + $0x9]]
        %v555 = vld [vmem:[%s368 + $0x9] sm:$0x1]
        %v556 = vstv %s554
        %v557 = vmul.f32 %v380, %v556
        %558 = vset.pattern.permute.xlu0 9
        %559 = vperm.xlu0 %558, %v382
        %v560 = vpop.permute.xlu0 %559
        %v562 = vadd.f32 %v557, %v560
        %v563 = vlaneseq
        %v564 = vshrl.u32 %v563, 7
        %v565 = vsub.s32 0, %v564
        %v566 = vrot.slane %v555, %v565
        %v567 = vadd.f32 %v562, %v566
        %v568 = vmax.f32 %v567, 0.0
        %s569 = sld [smem:[#allocation6 + $0x9]]
        %v570 = vstv %s569
        %v571 = vmul.f32 %v568, %v570
        %v572 = vadd.f32 %v553, %v571
        %s573 = sld [smem:[#allocation3 + $0xa]]
        %v574 = vld [vmem:[%s368 + $0xa] sm:$0x1]
        %v575 = vstv %s573
        %v576 = vmul.f32 %v380, %v575
        %577 = vset.pattern.permute.xlu0 10
        %578 = vperm.xlu0 %577, %v382
        %v579 = vpop.permute.xlu0 %578
        %v581 = vadd.f32 %v576, %v579
        %v582 = vlaneseq
        %v583 = vshrl.u32 %v582, 7
        %v584 = vsub.s32 0, %v583
        %v585 = vrot.slane %v574, %v584
        %v586 = vadd.f32 %v581, %v585
        %v587 = vmax.f32 %v586, 0.0
        %s588 = sld [smem:[#allocation6 + $0xa]]
        %v589 = vstv %s588
        %v590 = vmul.f32 %v587, %v589
        %v591 = vadd.f32 %v572, %v590
        %s592 = sld [smem:[#allocation3 + $0xb]]
        %v593 = vld [vmem:[%s368 + $0xb] sm:$0x1]
        %v594 = vstv %s592
        %v595 = vmul.f32 %v380, %v594
        %596 = vset.pattern.permute.xlu0 11
        %597 = vperm.xlu0 %596, %v382
        %v598 = vpop.permute.xlu0 %597
        %v600 = vadd.f32 %v595, %v598
        %v601 = vlaneseq
        %v602 = vshrl.u32 %v601, 7
        %v603 = vsub.s32 0, %v602
        %v604 = vrot.slane %v593, %v603
        %v605 = vadd.f32 %v600, %v604
        %v606 = vmax.f32 %v605, 0.0
        %s607 = sld [smem:[#allocation6 + $0xb]]
        %v608 = vstv %s607
        %v609 = vmul.f32 %v606, %v608
        %v610 = vadd.f32 %v591, %v609
        %s611 = sld [smem:[#allocation3 + $0xc]]
        %v612 = vld [vmem:[%s368 + $0xc] sm:$0x1]
        %v613 = vstv %s611
        %v614 = vmul.f32 %v380, %v613
        %615 = vset.pattern.permute.xlu0 12
        %616 = vperm.xlu0 %615, %v382
        %v617 = vpop.permute.xlu0 %616
        %v619 = vadd.f32 %v614, %v617
        %v620 = vlaneseq
        %v621 = vshrl.u32 %v620, 7
        %v622 = vsub.s32 0, %v621
        %v623 = vrot.slane %v612, %v622
        %v624 = vadd.f32 %v619, %v623
        %v625 = vmax.f32 %v624, 0.0
        %s626 = sld [smem:[#allocation6 + $0xc]]
        %v627 = vstv %s626
        %v628 = vmul.f32 %v625, %v627
        %v629 = vadd.f32 %v610, %v628
        %s630 = sld [smem:[#allocation3 + $0xd]]
        %v631 = vld [vmem:[%s368 + $0xd] sm:$0x1]
        %v632 = vstv %s630
        %v633 = vmul.f32 %v380, %v632
        %634 = vset.pattern.permute.xlu0 13
        %635 = vperm.xlu0 %634, %v382
        %v636 = vpop.permute.xlu0 %635
        %v638 = vadd.f32 %v633, %v636
        %v639 = vlaneseq
        %v640 = vshrl.u32 %v639, 7
        %v641 = vsub.s32 0, %v640
        %v642 = vrot.slane %v631, %v641
        %v643 = vadd.f32 %v638, %v642
        %v644 = vmax.f32 %v643, 0.0
        %s645 = sld [smem:[#allocation6 + $0xd]]
        %v646 = vstv %s645
        %v647 = vmul.f32 %v644, %v646
        %v648 = vadd.f32 %v629, %v647
        %s649 = sld [smem:[#allocation3 + $0xe]]
        %v650 = vld [vmem:[%s368 + $0xe] sm:$0x1]
        %v651 = vstv %s649
        %v652 = vmul.f32 %v380, %v651
        %653 = vset.pattern.permute.xlu0 14
        %654 = vperm.xlu0 %653, %v382
        %v655 = vpop.permute.xlu0 %654
        %v657 = vadd.f32 %v652, %v655
        %v658 = vlaneseq
        %v659 = vshrl.u32 %v658, 7
        %v660 = vsub.s32 0, %v659
        %v661 = vrot.slane %v650, %v660
        %v662 = vadd.f32 %v657, %v661
        %v663 = vmax.f32 %v662, 0.0
        %s664 = sld [smem:[#allocation6 + $0xe]]
        %v665 = vstv %s664
        %v666 = vmul.f32 %v663, %v665
        %v667 = vadd.f32 %v648, %v666
        %s668 = sld [smem:[#allocation3 + $0xf]]
        %v669 = vld [vmem:[%s368 + $0xf] sm:$0x1]
        %v670 = vstv %s668
        %v671 = vmul.f32 %v380, %v670
        %672 = vset.pattern.permute.xlu0 15
        %673 = vperm.xlu0 %672, %v382
        %v674 = vpop.permute.xlu0 %673
        %v676 = vadd.f32 %v671, %v674
        %v677 = vlaneseq
        %v678 = vshrl.u32 %v677, 7
        %v679 = vsub.s32 0, %v678
        %v680 = vrot.slane %v669, %v679
        %v681 = vadd.f32 %v676, %v680
        %v682 = vmax.f32 %v681, 0.0
        %s683 = sld [smem:[#allocation6 + $0xf]]
        %v684 = vstv %s683
        %v685 = vmul.f32 %v682, %v684
        %v686 = vadd.f32 %v667, %v685
        %s687 = sld [smem:[#allocation3 + $0x10]]
        %v688 = vld [vmem:[%s368 + $0x10] sm:$0x1]
        %v689 = vstv %s687
        %v690 = vmul.f32 %v380, %v689
        %691 = vset.pattern.permute.xlu0 16
        %692 = vperm.xlu0 %691, %v382
        %v693 = vpop.permute.xlu0 %692
        %v695 = vadd.f32 %v690, %v693
        %v696 = vlaneseq
        %v697 = vshrl.u32 %v696, 7
        %v698 = vsub.s32 0, %v697
        %v699 = vrot.slane %v688, %v698
        %v700 = vadd.f32 %v695, %v699
        %v701 = vmax.f32 %v700, 0.0
        %s702 = sld [smem:[#allocation6 + $0x10]]
        %v703 = vstv %s702
        %v704 = vmul.f32 %v701, %v703
        %v705 = vadd.f32 %v686, %v704
        %s706 = sld [smem:[#allocation3 + $0x11]]
        %v707 = vld [vmem:[%s368 + $0x11] sm:$0x1]
        %v708 = vstv %s706
        %v709 = vmul.f32 %v380, %v708
        %710 = vset.pattern.permute.xlu0 17
        %711 = vperm.xlu0 %710, %v382
        %v712 = vpop.permute.xlu0 %711
        %v714 = vadd.f32 %v709, %v712
        %v715 = vlaneseq
        %v716 = vshrl.u32 %v715, 7
        %v717 = vsub.s32 0, %v716
        %v718 = vrot.slane %v707, %v717
        %v719 = vadd.f32 %v714, %v718
        %v720 = vmax.f32 %v719, 0.0
        %s721 = sld [smem:[#allocation6 + $0x11]]
        %v722 = vstv %s721
        %v723 = vmul.f32 %v720, %v722
        %v724 = vadd.f32 %v705, %v723
        %s725 = sld [smem:[#allocation3 + $0x12]]
        %v726 = vld [vmem:[%s368 + $0x12] sm:$0x1]
        %v727 = vstv %s725
        %v728 = vmul.f32 %v380, %v727
        %729 = vset.pattern.permute.xlu0 18
        %730 = vperm.xlu0 %729, %v382
        %v731 = vpop.permute.xlu0 %730
        %v733 = vadd.f32 %v728, %v731
        %v734 = vlaneseq
        %v735 = vshrl.u32 %v734, 7
        %v736 = vsub.s32 0, %v735
        %v737 = vrot.slane %v726, %v736
        %v738 = vadd.f32 %v733, %v737
        %v739 = vmax.f32 %v738, 0.0
        %s740 = sld [smem:[#allocation6 + $0x12]]
        %v741 = vstv %s740
        %v742 = vmul.f32 %v739, %v741
        %v743 = vadd.f32 %v724, %v742
        %s744 = sld [smem:[#allocation3 + $0x13]]
        %v745 = vld [vmem:[%s368 + $0x13] sm:$0x1]
        %v746 = vstv %s744
        %v747 = vmul.f32 %v380, %v746
        %748 = vset.pattern.permute.xlu0 19
        %749 = vperm.xlu0 %748, %v382
        %v750 = vpop.permute.xlu0 %749
        %v752 = vadd.f32 %v747, %v750
        %v753 = vlaneseq
        %v754 = vshrl.u32 %v753, 7
        %v755 = vsub.s32 0, %v754
        %v756 = vrot.slane %v745, %v755
        %v757 = vadd.f32 %v752, %v756
        %v758 = vmax.f32 %v757, 0.0
        %s759 = sld [smem:[#allocation6 + $0x13]]
        %v760 = vstv %s759
        %v761 = vmul.f32 %v758, %v760
        %v762 = vadd.f32 %v743, %v761
        %s763 = sld [smem:[#allocation3 + $0x14]]
        %v764 = vld [vmem:[%s368 + $0x14] sm:$0x1]
        %v765 = vstv %s763
        %v766 = vmul.f32 %v380, %v765
        %767 = vset.pattern.permute.xlu0 20
        %768 = vperm.xlu0 %767, %v382
        %v769 = vpop.permute.xlu0 %768
        %v771 = vadd.f32 %v766, %v769
        %v772 = vlaneseq
        %v773 = vshrl.u32 %v772, 7
        %v774 = vsub.s32 0, %v773
        %v775 = vrot.slane %v764, %v774
        %v776 = vadd.f32 %v771, %v775
        %v777 = vmax.f32 %v776, 0.0
        %s778 = sld [smem:[#allocation6 + $0x14]]
        %v779 = vstv %s778
        %v780 = vmul.f32 %v777, %v779
        %v781 = vadd.f32 %v762, %v780
        %s782 = sld [smem:[#allocation3 + $0x15]]
        %v783 = vld [vmem:[%s368 + $0x15] sm:$0x1]
        %v784 = vstv %s782
        %v785 = vmul.f32 %v380, %v784
        %786 = vset.pattern.permute.xlu0 21
        %787 = vperm.xlu0 %786, %v382
        %v788 = vpop.permute.xlu0 %787
        %v790 = vadd.f32 %v785, %v788
        %v791 = vlaneseq
        %v792 = vshrl.u32 %v791, 7
        %v793 = vsub.s32 0, %v792
        %v794 = vrot.slane %v783, %v793
        %v795 = vadd.f32 %v790, %v794
        %v796 = vmax.f32 %v795, 0.0
        %s797 = sld [smem:[#allocation6 + $0x15]]
        %v798 = vstv %s797
        %v799 = vmul.f32 %v796, %v798
        %v800 = vadd.f32 %v781, %v799
        %s801 = sld [smem:[#allocation3 + $0x16]]
        %v802 = vld [vmem:[%s368 + $0x16] sm:$0x1]
        %v803 = vstv %s801
        %v804 = vmul.f32 %v380, %v803
        %805 = vset.pattern.permute.xlu0 22
        %806 = vperm.xlu0 %805, %v382
        %v807 = vpop.permute.xlu0 %806
        %v809 = vadd.f32 %v804, %v807
        %v810 = vlaneseq
        %v811 = vshrl.u32 %v810, 7
        %v812 = vsub.s32 0, %v811
        %v813 = vrot.slane %v802, %v812
        %v814 = vadd.f32 %v809, %v813
        %v815 = vmax.f32 %v814, 0.0
        %s816 = sld [smem:[#allocation6 + $0x16]]
        %v817 = vstv %s816
        %v818 = vmul.f32 %v815, %v817
        %v819 = vadd.f32 %v800, %v818
        %s820 = sld [smem:[#allocation3 + $0x17]]
        %v821 = vld [vmem:[%s368 + $0x17] sm:$0x1]
        %v822 = vstv %s820
        %v823 = vmul.f32 %v380, %v822
        %824 = vset.pattern.permute.xlu0 23
        %825 = vperm.xlu0 %824, %v382
        %v826 = vpop.permute.xlu0 %825
        %v828 = vadd.f32 %v823, %v826
        %v829 = vlaneseq
        %v830 = vshrl.u32 %v829, 7
        %v831 = vsub.s32 0, %v830
        %v832 = vrot.slane %v821, %v831
        %v833 = vadd.f32 %v828, %v832
        %v834 = vmax.f32 %v833, 0.0
        %s835 = sld [smem:[#allocation6 + $0x17]]
        %v836 = vstv %s835
        %v837 = vmul.f32 %v834, %v836
        %v838 = vadd.f32 %v819, %v837
        %s839 = sld [smem:[#allocation3 + $0x18]]
        %v840 = vld [vmem:[%s368 + $0x18] sm:$0x1]
        %v841 = vstv %s839
        %v842 = vmul.f32 %v380, %v841
        %843 = vset.pattern.permute.xlu0 24
        %844 = vperm.xlu0 %843, %v382
        %v845 = vpop.permute.xlu0 %844
        %v847 = vadd.f32 %v842, %v845
        %v848 = vlaneseq
        %v849 = vshrl.u32 %v848, 7
        %v850 = vsub.s32 0, %v849
        %v851 = vrot.slane %v840, %v850
        %v852 = vadd.f32 %v847, %v851
        %v853 = vmax.f32 %v852, 0.0
        %s854 = sld [smem:[#allocation6 + $0x18]]
        %v855 = vstv %s854
        %v856 = vmul.f32 %v853, %v855
        %v857 = vadd.f32 %v838, %v856
        %s858 = sld [smem:[#allocation3 + $0x19]]
        %v859 = vld [vmem:[%s368 + $0x19] sm:$0x1]
        %v860 = vstv %s858
        %v861 = vmul.f32 %v380, %v860
        %862 = vset.pattern.permute.xlu0 25
        %863 = vperm.xlu0 %862, %v382
        %v864 = vpop.permute.xlu0 %863
        %v866 = vadd.f32 %v861, %v864
        %v867 = vlaneseq
        %v868 = vshrl.u32 %v867, 7
        %v869 = vsub.s32 0, %v868
        %v870 = vrot.slane %v859, %v869
        %v871 = vadd.f32 %v866, %v870
        %v872 = vmax.f32 %v871, 0.0
        %s873 = sld [smem:[#allocation6 + $0x19]]
        %v874 = vstv %s873
        %v875 = vmul.f32 %v872, %v874
        %v876 = vadd.f32 %v857, %v875
        %s877 = sld [smem:[#allocation3 + $0x1a]]
        %v878 = vld [vmem:[%s368 + $0x1a] sm:$0x1]
        %v879 = vstv %s877
        %v880 = vmul.f32 %v380, %v879
        %881 = vset.pattern.permute.xlu0 26
        %882 = vperm.xlu0 %881, %v382
        %v883 = vpop.permute.xlu0 %882
        %v885 = vadd.f32 %v880, %v883
        %v886 = vlaneseq
        %v887 = vshrl.u32 %v886, 7
        %v888 = vsub.s32 0, %v887
        %v889 = vrot.slane %v878, %v888
        %v890 = vadd.f32 %v885, %v889
        %v891 = vmax.f32 %v890, 0.0
        %s892 = sld [smem:[#allocation6 + $0x1a]]
        %v893 = vstv %s892
        %v894 = vmul.f32 %v891, %v893
        %v895 = vadd.f32 %v876, %v894
        %s896 = sld [smem:[#allocation3 + $0x1b]]
        %v897 = vld [vmem:[%s368 + $0x1b] sm:$0x1]
        %v898 = vstv %s896
        %v899 = vmul.f32 %v380, %v898
        %900 = vset.pattern.permute.xlu0 27
        %901 = vperm.xlu0 %900, %v382
        %v902 = vpop.permute.xlu0 %901
        %v904 = vadd.f32 %v899, %v902
        %v905 = vlaneseq
        %v906 = vshrl.u32 %v905, 7
        %v907 = vsub.s32 0, %v906
        %v908 = vrot.slane %v897, %v907
        %v909 = vadd.f32 %v904, %v908
        %v910 = vmax.f32 %v909, 0.0
        %s911 = sld [smem:[#allocation6 + $0x1b]]
        %v912 = vstv %s911
        %v913 = vmul.f32 %v910, %v912
        %v914 = vadd.f32 %v895, %v913
        %s915 = sld [smem:[#allocation3 + $0x1c]]
        %v916 = vld [vmem:[%s368 + $0x1c] sm:$0x1]
        %v917 = vstv %s915
        %v918 = vmul.f32 %v380, %v917
        %919 = vset.pattern.permute.xlu0 28
        %920 = vperm.xlu0 %919, %v382
        %v921 = vpop.permute.xlu0 %920
        %v923 = vadd.f32 %v918, %v921
        %v924 = vlaneseq
        %v925 = vshrl.u32 %v924, 7
        %v926 = vsub.s32 0, %v925
        %v927 = vrot.slane %v916, %v926
        %v928 = vadd.f32 %v923, %v927
        %v929 = vmax.f32 %v928, 0.0
        %s930 = sld [smem:[#allocation6 + $0x1c]]
        %v931 = vstv %s930
        %v932 = vmul.f32 %v929, %v931
        %v933 = vadd.f32 %v914, %v932
        %s934 = sld [smem:[#allocation3 + $0x1d]]
        %v935 = vld [vmem:[%s368 + $0x1d] sm:$0x1]
        %v936 = vstv %s934
        %v937 = vmul.f32 %v380, %v936
        %938 = vset.pattern.permute.xlu0 29
        %939 = vperm.xlu0 %938, %v382
        %v940 = vpop.permute.xlu0 %939
        %v942 = vadd.f32 %v937, %v940
        %v943 = vlaneseq
        %v944 = vshrl.u32 %v943, 7
        %v945 = vsub.s32 0, %v944
        %v946 = vrot.slane %v935, %v945
        %v947 = vadd.f32 %v942, %v946
        %v948 = vmax.f32 %v947, 0.0
        %s949 = sld [smem:[#allocation6 + $0x1d]]
        %v950 = vstv %s949
        %v951 = vmul.f32 %v948, %v950
        %v952 = vadd.f32 %v933, %v951
        %s953 = sld [smem:[#allocation3 + $0x1e]]
        %v954 = vld [vmem:[%s368 + $0x1e] sm:$0x1]
        %v955 = vstv %s953
        %v956 = vmul.f32 %v380, %v955
        %957 = vset.pattern.permute.xlu0 30
        %958 = vperm.xlu0 %957, %v382
        %v959 = vpop.permute.xlu0 %958
        %v961 = vadd.f32 %v956, %v959
        %v962 = vlaneseq
        %v963 = vshrl.u32 %v962, 7
        %v964 = vsub.s32 0, %v963
        %v965 = vrot.slane %v954, %v964
        %v966 = vadd.f32 %v961, %v965
        %v967 = vmax.f32 %v966, 0.0
        %s968 = sld [smem:[#allocation6 + $0x1e]]
        %v969 = vstv %s968
        %v970 = vmul.f32 %v967, %v969
        %v971 = vadd.f32 %v952, %v970
        %s972 = sld [smem:[#allocation3 + $0x1f]]
        %v973 = vld [vmem:[%s368 + $0x1f] sm:$0x1]
        %v974 = vstv %s972
        %v975 = vmul.f32 %v380, %v974
        %976 = vset.pattern.permute.xlu0 31
        %977 = vperm.xlu0 %976, %v382
        %v978 = vpop.permute.xlu0 %977
        %v980 = vadd.f32 %v975, %v978
        %v981 = vlaneseq
        %v982 = vshrl.u32 %v981, 7
        %v983 = vsub.s32 0, %v982
        %v984 = vrot.slane %v973, %v983
        %v985 = vadd.f32 %v980, %v984
        %v986 = vmax.f32 %v985, 0.0
        %s987 = sld [smem:[#allocation6 + $0x1f]]
        %v988 = vstv %s987
        %v989 = vmul.f32 %v986, %v988
        %v990 = vadd.f32 %v971, %v989
        %v991 = vstv %s379
        %v992 = vadd.f32 %v990, %v991
        %v993 = vsub.f32 0.0, %v992
        %v994 = vmul.f32 %v993, 1.442695
        %v995 = vpow.pop %v994
        %v996 = vadd.f32 %v995, 1.0
        %v997 = vrcp.pop %v996
        %vm998 = vcmask 64512
        %999 = vst.msk [vmem:[%s353] sm:$0xff] %vm998, %v997
        %s1000 = sand.u32 %s203, 1
        %s1001 = scalar_lea.sflag [#allocation4], %s1000
        %s1002 = sand.u32 %s203, 1
        %s1003 = smul.addr %s1002, 8
        %s1004 = scalar_lea.vmem [#allocation8], %s1003
        // Predicated region
        $region53: #{mlp_adjacency.1} parent=43 // pred_check
          %p1005 = pneg %p213
        $region54: #{mlp_adjacency.1} parent=43 // pred_check_branch
          %1007 = sbr.rel (%p1005) target = $region56
        $region55: #{mlp_adjacency.1} parent=43 // pred_region
          %s1009 = ssub.s32 128, 128
          %1010 = vsyncadd %s1001, %s1009
          %s1011 = sadd.s32 %s30, %s29
          %s1012 = sadd.s32 %s1011, %s28
          %s1013 = smul.addr %s1012, 128
          %s1014 = scalar_lea.hbm %s6, %s1013
          %s1016 = sshll.u32 %s1004, 4
          %s1017 = int_to_ptr.vmem [resolvable:$true] %s1016
          %1019 = dma.vmem_to_hbm [thread:$0]  %s1017, 128, %s1014, %s1001
        $region56: #{mlp_adjacency.1} parent=43 // pred_fallthru
          _
      $region44: #{mlp_adjacency.1} parent=5 // pred_fallthru
        _
      %p1020 = scmp.le.s32.totalorder 2, %s18
      // Predicated region
      $region57: #{mlp_adjacency.1} parent=5 // pred_check
        %p1021 = pneg %p1020
      $region58: #{mlp_adjacency.1} parent=5 // pred_check_branch
        %1023 = sbr.rel (%p1021) target = $region60
      $region59: #{mlp_adjacency.1} parent=5 // pred_region
        %s1024 = ssub.s32 %s18, 2
        // Predicated region
        $region61: #{mlp_adjacency.1} parent=59 // pred_check
          %p1025 = pneg %p219
        $region62: #{mlp_adjacency.1} parent=59 // pred_check_branch
          %1027 = sbr.rel (%p1025) target = $region64
        $region63: #{mlp_adjacency.1} parent=59 // pred_region
          %s1028 = sand.u32 %s204, 1
          %s1029 = scalar_lea.sflag [#allocation4], %s1028
          %s1030 = sand.u32 %s204, 1
          %s1031 = smul.addr %s1030, 8
          %s1032 = scalar_lea.vmem [#allocation8], %s1031
          %1033 = dma.done %s1029, 128
        $region64: #{mlp_adjacency.1} parent=59 // pred_fallthru
          _
      $region60: #{mlp_adjacency.1} parent=5 // pred_fallthru
        _
    $region6: #{mlp_adjacency.1} parent=1 // loop_footer
      %s22 = sadd.s32 1, %s18
    $region7: #{mlp_adjacency.1} parent=1 // loop_footer_branch
      %17 = sbr.rel target = $region3
    $region8: #{mlp_adjacency.1} parent=1 // loop_exit
      _
    %1034 = vsyncpa [#allocation4], 1
    %s1035 = scalar_lea.sflag [#allocation4], 1
    %1036 = vsyncpa %s1035, 1
    %1037 = vsyncpa [#allocation5], 1
    %s1038 = scalar_lea.sflag [#allocation5], 1
    %1039 = vsyncpa %s1038, 1
    %1040 = vsyncpa [#allocation7], 1

</llo_original>
